<compile_context>
chip_gen: v6e
topology: v6e:2x2x1
jax: 0.10.0
libtpu: 0.0.40
codegen_flags: <defaults>
</compile_context>

<pallas_src>
import functools

import jax
import jax.numpy as jnp
import numpy as np
from jax import lax
from jax.experimental import pallas as pl
from jax.experimental.pallas import tpu as pltpu


# ---------------------------------------------------------------------------
# Pallas kernel: full bottleneck forward for one batch element per grid step.
# ---------------------------------------------------------------------------
def bottleneck_kernel(x_ref, w1_ref, w2_ref, w3_ref, b1_ref, b2_ref, b3_ref,
                      o_ref, pad_ref, col0_ref, col1_ref, acc_ref,
                      *, H, W, widthp):
    HW = H * W
    bf16 = jnp.bfloat16

    # ---- conv1 (1x1) + folded bn1 + relu ----------------------------------
    y1 = jnp.dot(x_ref[0], w1_ref[...], preferred_element_type=jnp.float32)
    y1 = jnp.maximum(y1 + b1_ref[...], 0.0).astype(bf16)           # (HW, widthp)

    # ---- conv2 (3x3, pad=1, stride=1): padded scratch + chunked im2col ----
    # Zero only the halo ring; the interior is fully overwritten every step.
    pad_ref[0:1, :, :] = jnp.zeros((1, W + 2, widthp), bf16)
    pad_ref[H + 1:H + 2, :, :] = jnp.zeros((1, W + 2, widthp), bf16)
    pad_ref[1:H + 1, 0:1, :] = jnp.zeros((H, 1, widthp), bf16)
    pad_ref[1:H + 1, W + 1:W + 2, :] = jnp.zeros((H, 1, widthp), bf16)
    # TODO(synk): sublane-align the interior start (pad only in H) to avoid the
    #             masked vst/vld from the offset-1 interior write / tap reads.
    pad_ref[1:H + 1, 1:W + 1, :] = y1.reshape(H, W, widthp)

    col_refs = (col0_ref, col1_ref)
    for g in range(3):                  # chunk g == kernel row ky = g
        col = col_refs[g % 2]           # alternate buffers: MXU(g) overlaps taps(g+1)
        for kx in range(3):
            tap = pad_ref[g:g + H, kx:kx + W, :]                   # (H, W, widthp)
            col[:, kx * widthp:(kx + 1) * widthp] = tap.reshape(HW, widthp)
        partial = jnp.dot(col[...],
                          w2_ref[g * 3 * widthp:(g + 1) * 3 * widthp, :],
                          preferred_element_type=jnp.float32)
        if g == 0:
            acc_ref[...] = partial
        else:
            acc_ref[...] += partial

    y2 = jnp.maximum(acc_ref[...] + b2_ref[...], 0.0).astype(bf16)  # (HW, widthp)

    # ---- conv3 (1x1) + folded bn3 + residual (f32) + relu ------------------
    y3 = jnp.dot(y2, w3_ref[...], preferred_element_type=jnp.float32) + b3_ref[...]
    res = x_ref[0].astype(jnp.float32)
    o_ref[0] = jnp.maximum(y3 + res, 0.0).astype(o_ref.dtype)


# ---------------------------------------------------------------------------
# Wrapper: layout conversion, BN folding into weights, padding, pallas_call.
# ---------------------------------------------------------------------------
def _vmem_limit_bytes():
    cap = 64 * 1024 * 1024
    try:
        cap = int(getattr(pltpu.get_tpu_info(), "vmem_capacity_bytes", cap))
    except Exception:
        pass
    # ~3/4 of physical VMEM, capped: ~48 MiB on v7x, ~96 MiB on v5e/v6e.
    return min((cap * 3) // 4, 100 * 1024 * 1024)


def bottleneck_forward(x_nchw, params, eps=1e-5):
    w1, w2, w3, bn1, bn2, bn3 = params
    N, Cin, H, W = x_nchw.shape
    width = w1.shape[0]
    Cout = w3.shape[0]
    HW = H * W
    assert Cin == Cout, "identity bottleneck requires inplanes == planes * 4"

    # lane-dense intermediate width (multiple of 128, no more)
    widthp = ((width + 127) // 128) * 128

    f32, bf16 = jnp.float32, jnp.bfloat16

    # NCHW -> (N, H*W, C), bf16 I/O (kernel is HBM-bound at the narrow stages)
    x_flat = jnp.transpose(x_nchw, (0, 2, 3, 1)).reshape(N, HW, Cin).astype(bf16)

    def bn_scale_bias(bn):
        g, b, m, v = bn
        s = g / jnp.sqrt(v + eps)
        return s, b - m * s

    s1, b1 = bn_scale_bias(bn1)
    s2, b2 = bn_scale_bias(bn2)
    s3, b3 = bn_scale_bias(bn3)

    # conv1 weight (OIHW 1x1) -> (Cin, widthp), BN1 scale folded into columns
    w1m = jnp.transpose(w1[:, :, 0, 0], (1, 0)) * s1.reshape(1, -1)     # (Cin, width)
    w1p = jnp.zeros((Cin, widthp), f32).at[:, :width].set(w1m).astype(bf16)
    b1p = jnp.zeros((1, widthp), f32).at[0, :width].set(b1)

    # conv2 weight (OIHW 3x3) -> (9*widthp, widthp), BN2 scale folded
    w2f = jnp.transpose(w2, (2, 3, 1, 0)).reshape(9, width, width)       # (t, in, out)
    w2f = w2f * s2.reshape(1, 1, -1)
    w2p = jnp.zeros((9, widthp, widthp), f32).at[:, :width, :width].set(w2f)
    w2big = w2p.reshape(9 * widthp, widthp).astype(bf16)
    b2p = jnp.zeros((1, widthp), f32).at[0, :width].set(b2)

    # conv3 weight (OIHW 1x1) -> (widthp, Cout), BN3 scale folded into columns
    w3m = jnp.transpose(w3[:, :, 0, 0], (1, 0)) * s3.reshape(1, -1)      # (width, Cout)
    w3p = jnp.zeros((widthp, Cout), f32).at[:width, :].set(w3m).astype(bf16)
    b3p = b3.reshape(1, Cout).astype(f32)

    # TODO(synk): add a spatial grid axis over H-row tiles with a 1-row halo
    #             (recompute the cheap 1x1 conv1 on the halo rows) so large
    #             feature maps fit v7x's 64 MiB VMEM and its second TensorCore
    #             gets work when N is 1 or odd.
    # TODO(synk): single-buffer the grid-invariant weight blocks (w2big) via
    #             pipeline_mode=pl.Buffered(1) once confirmed supported by the
    #             installed Pallas; they are double-buffered by default here.
    out_flat = pl.pallas_call(
        functools.partial(bottleneck_kernel, H=H, W=W, widthp=widthp),
        out_shape=jax.ShapeDtypeStruct((N, HW, Cout), bf16),
        grid_spec=pltpu.PrefetchScalarGridSpec(
            num_scalar_prefetch=0,
            grid=(N,),
            in_specs=[
                pl.BlockSpec((1, HW, Cin), lambda n: (n, 0, 0)),
                pl.BlockSpec((Cin, widthp), lambda n: (0, 0)),
                pl.BlockSpec((9 * widthp, widthp), lambda n: (0, 0)),
                pl.BlockSpec((widthp, Cout), lambda n: (0, 0)),
                pl.BlockSpec((1, widthp), lambda n: (0, 0)),
                pl.BlockSpec((1, widthp), lambda n: (0, 0)),
                pl.BlockSpec((1, Cout), lambda n: (0, 0)),
            ],
            out_specs=pl.BlockSpec((1, HW, Cout), lambda n: (n, 0, 0)),
            scratch_shapes=[
                pltpu.VMEM((H + 2, W + 2, widthp), bf16),   # zero-padded y1
                pltpu.VMEM((HW, 3 * widthp), bf16),         # im2col chunk, slot 0
                pltpu.VMEM((HW, 3 * widthp), bf16),         # im2col chunk, slot 1
                pltpu.VMEM((HW, widthp), f32),              # conv2 f32 accumulator
            ],
        ),
        compiler_params=pltpu.CompilerParams(
            dimension_semantics=("parallel",),
            vmem_limit_bytes=_vmem_limit_bytes(),
        ),
    )(x_flat, w1p, w2big, w3p, b1p, b2p, b3p)

    # (N, H*W, Cout) -> NCHW, back to f32 to match the module's output dtype.
    return jnp.transpose(out_flat.reshape(N, H, W, Cout), (0, 3, 1, 2)).astype(f32)


# ---------------------------------------------------------------------------
# Plain-JAX f32 reference (eval-mode BatchNorm) for verification.
# ---------------------------------------------------------------------------
def bottleneck_ref(x, params, eps=1e-5):
    w1, w2, w3, bn1, bn2, bn3 = params
    dn = ('NCHW', 'OIHW', 'NCHW')

    def bn(y, p):
        g, b, m, v = (t.reshape(1, -1, 1, 1) for t in p)
        return (y - m) / jnp.sqrt(v + eps) * g + b

    out = lax.conv_general_dilated(x, w1, (1, 1), 'VALID', dimension_numbers=dn)
    out = jax.nn.relu(bn(out, bn1))
    out = lax.conv_general_dilated(out, w2, (1, 1), ((1, 1), (1, 1)),
                                   dimension_numbers=dn)
    out = jax.nn.relu(bn(out, bn2))
    out = lax.conv_general_dilated(out, w3, (1, 1), 'VALID', dimension_numbers=dn)
    out = bn(out, bn3)
    return jax.nn.relu(out + x)


# ---------------------------------------------------------------------------
if __name__ == "__main__":
    # Small shapes consistent with Bottleneck defaults: residual add requires
    # inplanes == planes * expansion (downsample=None, stride=1).
    N, planes, H, W = 2, 4, 8, 8
    inplanes = planes * 4          # 16
    width = planes                 # base_width=64, groups=1 -> width = planes
    Cout = planes * 4              # 16

    key = jax.random.PRNGKey(0)
    ks = jax.random.split(key, 16)

    x = jax.random.normal(ks[0], (N, inplanes, H, W), jnp.float32)

    # Conv weights in PyTorch OIHW convention.
    w1 = 0.1 * jax.random.normal(ks[1], (width, inplanes, 1, 1), jnp.float32)
    w2 = 0.1 * jax.random.normal(ks[2], (width, width, 3, 3), jnp.float32)
    w3 = 0.1 * jax.random.normal(ks[3], (Cout, width, 1, 1), jnp.float32)

    def bn_params(k, c):
        k1, k2, k3, k4 = jax.random.split(k, 4)
        gamma = 1.0 + 0.1 * jax.random.normal(k1, (c,), jnp.float32)
        beta = 0.1 * jax.random.normal(k2, (c,), jnp.float32)
        mean = 0.1 * jax.random.normal(k3, (c,), jnp.float32)
        var = 0.5 + jax.random.uniform(k4, (c,), jnp.float32)
        return (gamma, beta, mean, var)

    bn1 = bn_params(ks[4], width)
    bn2 = bn_params(ks[5], width)
    bn3 = bn_params(ks[6], Cout)

    params = (w1, w2, w3, bn1, bn2, bn3)

    out = bottleneck_forward(x, params)
    out = jax.block_until_ready(out)

    ref = jax.block_until_ready(bottleneck_ref(x, params))
    # bf16 matmul operands + bf16 I/O (f32 accumulation) -> loose tolerance.
    np.testing.assert_allclose(np.asarray(out), np.asarray(ref),
                               rtol=5e-2, atol=5e-2)

    print("KERNEL_OK")
</pallas_src>

<mosaic_0001>
module attributes {stable_mosaic.version = 11 : i64} {
  func.func @bottleneck_kernel(%arg0: i32, %arg1: memref<1x64x16xbf16, #tpu.memory_space<vmem>>, %arg2: memref<16x128xbf16, #tpu.memory_space<vmem>>, %arg3: memref<1152x128xbf16, #tpu.memory_space<vmem>>, %arg4: memref<128x16xbf16, #tpu.memory_space<vmem>>, %arg5: memref<1x128xf32, #tpu.memory_space<vmem>>, %arg6: memref<1x128xf32, #tpu.memory_space<vmem>>, %arg7: memref<1x16xf32, #tpu.memory_space<vmem>>, %arg8: memref<1x64x16xbf16, #tpu.memory_space<vmem>>, %arg9: memref<10x10x128xbf16, #tpu.memory_space<vmem>>, %arg10: memref<64x384xbf16, #tpu.memory_space<vmem>>, %arg11: memref<64x384xbf16, #tpu.memory_space<vmem>>, %arg12: memref<64x128xf32, #tpu.memory_space<vmem>>) attributes {dimension_semantics = [#tpu.dimension_semantics<parallel>], iteration_bounds = array<i64: 2>, scalar_prefetch = 0 : i64, scratch_operands = 4 : i64, tpu.core_type = #tpu.core_type<tc>, window_params = [{transform_indices = @transform_0, window_bounds = array<i64: 1, 64, 16>}, {pipeline_mode = #tpu.pipeline_mode<synchronous>, transform_indices = @transform_1, window_bounds = array<i64: 16, 128>}, {pipeline_mode = #tpu.pipeline_mode<synchronous>, transform_indices = @transform_2, window_bounds = array<i64: 1152, 128>}, {pipeline_mode = #tpu.pipeline_mode<synchronous>, transform_indices = @transform_3, window_bounds = array<i64: 128, 16>}, {pipeline_mode = #tpu.pipeline_mode<synchronous>, transform_indices = @transform_4, window_bounds = array<i64: 1, 128>}, {pipeline_mode = #tpu.pipeline_mode<synchronous>, transform_indices = @transform_5, window_bounds = array<i64: 1, 128>}, {pipeline_mode = #tpu.pipeline_mode<synchronous>, transform_indices = @transform_6, window_bounds = array<i64: 1, 16>}, {transform_indices = @transform_7, window_bounds = array<i64: 1, 64, 16>}]} {
    %c0 = arith.constant 0 : index
    %c0_0 = arith.constant 0 : index
    %c0_1 = arith.constant 0 : index
    %0 = vector.load %arg1[%c0, %c0_0, %c0_1] : memref<1x64x16xbf16, #tpu.memory_space<vmem>>, vector<1x64x16xbf16>
    %1 = vector.shape_cast %0 : vector<1x64x16xbf16> to vector<64x16xbf16>
    %c0_2 = arith.constant 0 : index
    %c0_3 = arith.constant 0 : index
    %2 = vector.load %arg2[%c0_2, %c0_3] : memref<16x128xbf16, #tpu.memory_space<vmem>>, vector<16x128xbf16>
    %cst = arith.constant dense<0.000000e+00> : vector<64x128xf32>
    %3 = tpu.matmul %1, %2, %cst {dimension_numbers = #tpu.dot_dimension_numbers<[1], [0], [0], [1], [0, 0, 1, 1], [], []>} : vector<64x16xbf16>, vector<16x128xbf16>, vector<64x128xf32> -> vector<64x128xf32>
    %c0_4 = arith.constant 0 : index
    %c0_5 = arith.constant 0 : index
    %4 = vector.load %arg5[%c0_4, %c0_5] : memref<1x128xf32, #tpu.memory_space<vmem>>, vector<1x128xf32>
    %5 = vector.broadcast %4 : vector<1x128xf32> to vector<64x128xf32>
    %6 = arith.addf %3, %5 : vector<64x128xf32>
    %cst_6 = arith.constant 0.000000e+00 : f32
    %7 = vector.broadcast %cst_6 : f32 to vector<64x128xf32>
    %8 = arith.maximumf %6, %7 : vector<64x128xf32>
    %9 = arith.truncf %8 : vector<64x128xf32> to vector<64x128xbf16>
    %cst_7 = arith.constant 0.000000e+00 : bf16
    %10 = vector.broadcast %cst_7 : bf16 to vector<1x10x128xbf16>
    %c0_8 = arith.constant 0 : index
    %c0_9 = arith.constant 0 : index
    %c0_10 = arith.constant 0 : index
    %11 = vector.load %arg9[%c0_8, %c0_9, %c0_10] : memref<10x10x128xbf16, #tpu.memory_space<vmem>>, vector<1x10x128xbf16>
    tpu.vector_store %arg9[%c0_8, %c0_9, %c0_10], %10 {strides = array<i32>} : memref<10x10x128xbf16, #tpu.memory_space<vmem>>, vector<1x10x128xbf16>,
    %cst_11 = arith.constant 0.000000e+00 : bf16
    %12 = vector.broadcast %cst_11 : bf16 to vector<1x10x128xbf16>
    %c9 = arith.constant 9 : index
    %c0_12 = arith.constant 0 : index
    %c0_13 = arith.constant 0 : index
    %13 = vector.load %arg9[%c9, %c0_12, %c0_13] : memref<10x10x128xbf16, #tpu.memory_space<vmem>>, vector<1x10x128xbf16>
    tpu.vector_store %arg9[%c9, %c0_12, %c0_13], %12 {strides = array<i32>} : memref<10x10x128xbf16, #tpu.memory_space<vmem>>, vector<1x10x128xbf16>,
    %cst_14 = arith.constant 0.000000e+00 : bf16
    %14 = vector.broadcast %cst_14 : bf16 to vector<8x1x128xbf16>
    %c1 = arith.constant 1 : index
    %c0_15 = arith.constant 0 : index
    %c0_16 = arith.constant 0 : index
    %15 = vector.load %arg9[%c1, %c0_15, %c0_16] : memref<10x10x128xbf16, #tpu.memory_space<vmem>>, vector<8x1x128xbf16>
    tpu.vector_store %arg9[%c1, %c0_15, %c0_16], %14 {strides = array<i32>} : memref<10x10x128xbf16, #tpu.memory_space<vmem>>, vector<8x1x128xbf16>,
    %cst_17 = arith.constant 0.000000e+00 : bf16
    %16 = vector.broadcast %cst_17 : bf16 to vector<8x1x128xbf16>
    %c1_18 = arith.constant 1 : index
    %c9_19 = arith.constant 9 : index
    %c0_20 = arith.constant 0 : index
    %17 = vector.load %arg9[%c1_18, %c9_19, %c0_20] : memref<10x10x128xbf16, #tpu.memory_space<vmem>>, vector<8x1x128xbf16>
    tpu.vector_store %arg9[%c1_18, %c9_19, %c0_20], %16 {strides = array<i32>} : memref<10x10x128xbf16, #tpu.memory_space<vmem>>, vector<8x1x128xbf16>,
    %18 = vector.shape_cast %9 : vector<64x128xbf16> to vector<8x8x128xbf16>
    %c1_21 = arith.constant 1 : index
    %c1_22 = arith.constant 1 : index
    %c0_23 = arith.constant 0 : index
    %19 = vector.load %arg9[%c1_21, %c1_22, %c0_23] : memref<10x10x128xbf16, #tpu.memory_space<vmem>>, vector<8x8x128xbf16>
    tpu.vector_store %arg9[%c1_21, %c1_22, %c0_23], %18 {strides = array<i32>} : memref<10x10x128xbf16, #tpu.memory_space<vmem>>, vector<8x8x128xbf16>,
    %c0_24 = arith.constant 0 : index
    %c0_25 = arith.constant 0 : index
    %c0_26 = arith.constant 0 : index
    %20 = vector.load %arg9[%c0_24, %c0_25, %c0_26] : memref<10x10x128xbf16, #tpu.memory_space<vmem>>, vector<8x8x128xbf16>
    %21 = vector.shape_cast %20 : vector<8x8x128xbf16> to vector<64x128xbf16>
    %c0_27 = arith.constant 0 : index
    %c0_28 = arith.constant 0 : index
    %22 = vector.load %arg10[%c0_27, %c0_28] : memref<64x384xbf16, #tpu.memory_space<vmem>>, vector<64x128xbf16>
    tpu.vector_store %arg10[%c0_27, %c0_28], %21 {strides = array<i32>} : memref<64x384xbf16, #tpu.memory_space<vmem>>, vector<64x128xbf16>,
    %c0_29 = arith.constant 0 : index
    %c1_30 = arith.constant 1 : index
    %c0_31 = arith.constant 0 : index
    %23 = vector.load %arg9[%c0_29, %c1_30, %c0_31] : memref<10x10x128xbf16, #tpu.memory_space<vmem>>, vector<8x8x128xbf16>
    %24 = vector.shape_cast %23 : vector<8x8x128xbf16> to vector<64x128xbf16>
    %c0_32 = arith.constant 0 : index
    %c128 = arith.constant 128 : index
    %25 = vector.load %arg10[%c0_32, %c128] : memref<64x384xbf16, #tpu.memory_space<vmem>>, vector<64x128xbf16>
    tpu.vector_store %arg10[%c0_32, %c128], %24 {strides = array<i32>} : memref<64x384xbf16, #tpu.memory_space<vmem>>, vector<64x128xbf16>,
    %c0_33 = arith.constant 0 : index
    %c2 = arith.constant 2 : index
    %c0_34 = arith.constant 0 : index
    %26 = vector.load %arg9[%c0_33, %c2, %c0_34] : memref<10x10x128xbf16, #tpu.memory_space<vmem>>, vector<8x8x128xbf16>
    %27 = vector.shape_cast %26 : vector<8x8x128xbf16> to vector<64x128xbf16>
    %c0_35 = arith.constant 0 : index
    %c256 = arith.constant 256 : index
    %28 = vector.load %arg10[%c0_35, %c256] : memref<64x384xbf16, #tpu.memory_space<vmem>>, vector<64x128xbf16>
    tpu.vector_store %arg10[%c0_35, %c256], %27 {strides = array<i32>} : memref<64x384xbf16, #tpu.memory_space<vmem>>, vector<64x128xbf16>,
    %c0_36 = arith.constant 0 : index
    %c0_37 = arith.constant 0 : index
    %29 = vector.load %arg10[%c0_36, %c0_37] : memref<64x384xbf16, #tpu.memory_space<vmem>>, vector<64x384xbf16>
    %c0_38 = arith.constant 0 : index
    %c0_39 = arith.constant 0 : index
    %30 = vector.load %arg3[%c0_38, %c0_39] : memref<1152x128xbf16, #tpu.memory_space<vmem>>, vector<384x128xbf16>
    %cst_40 = arith.constant dense<0.000000e+00> : vector<64x128xf32>
    %31 = tpu.matmul %29, %30, %cst_40 {dimension_numbers = #tpu.dot_dimension_numbers<[1], [0], [0], [1], [0, 0, 1, 1], [], []>} : vector<64x384xbf16>, vector<384x128xbf16>, vector<64x128xf32> -> vector<64x128xf32>
    %c0_41 = arith.constant 0 : index
    %c0_42 = arith.constant 0 : index
    %32 = vector.load %arg12[%c0_41, %c0_42] : memref<64x128xf32, #tpu.memory_space<vmem>>, vector<64x128xf32>
    tpu.vector_store %arg12[%c0_41, %c0_42], %31 {strides = array<i32>} : memref<64x128xf32, #tpu.memory_space<vmem>>, vector<64x128xf32>,
    %c1_43 = arith.constant 1 : index
    %c0_44 = arith.constant 0 : index
    %c0_45 = arith.constant 0 : index
    %33 = vector.load %arg9[%c1_43, %c0_44, %c0_45] : memref<10x10x128xbf16, #tpu.memory_space<vmem>>, vector<8x8x128xbf16>
    %34 = vector.shape_cast %33 : vector<8x8x128xbf16> to vector<64x128xbf16>
    %c0_46 = arith.constant 0 : index
    %c0_47 = arith.constant 0 : index
    %35 = vector.load %arg11[%c0_46, %c0_47] : memref<64x384xbf16, #tpu.memory_space<vmem>>, vector<64x128xbf16>
    tpu.vector_store %arg11[%c0_46, %c0_47], %34 {strides = array<i32>} : memref<64x384xbf16, #tpu.memory_space<vmem>>, vector<64x128xbf16>,
    %c1_48 = arith.constant 1 : index
    %c1_49 = arith.constant 1 : index
    %c0_50 = arith.constant 0 : index
    %36 = vector.load %arg9[%c1_48, %c1_49, %c0_50] : memref<10x10x128xbf16, #tpu.memory_space<vmem>>, vector<8x8x128xbf16>
    %37 = vector.shape_cast %36 : vector<8x8x128xbf16> to vector<64x128xbf16>
    %c0_51 = arith.constant 0 : index
    %c128_52 = arith.constant 128 : index
    %38 = vector.load %arg11[%c0_51, %c128_52] : memref<64x384xbf16, #tpu.memory_space<vmem>>, vector<64x128xbf16>
    tpu.vector_store %arg11[%c0_51, %c128_52], %37 {strides = array<i32>} : memref<64x384xbf16, #tpu.memory_space<vmem>>, vector<64x128xbf16>,
    %c1_53 = arith.constant 1 : index
    %c2_54 = arith.constant 2 : index
    %c0_55 = arith.constant 0 : index
    %39 = vector.load %arg9[%c1_53, %c2_54, %c0_55] : memref<10x10x128xbf16, #tpu.memory_space<vmem>>, vector<8x8x128xbf16>
    %40 = vector.shape_cast %39 : vector<8x8x128xbf16> to vector<64x128xbf16>
    %c0_56 = arith.constant 0 : index
    %c256_57 = arith.constant 256 : index
    %41 = vector.load %arg11[%c0_56, %c256_57] : memref<64x384xbf16, #tpu.memory_space<vmem>>, vector<64x128xbf16>
    tpu.vector_store %arg11[%c0_56, %c256_57], %40 {strides = array<i32>} : memref<64x384xbf16, #tpu.memory_space<vmem>>, vector<64x128xbf16>,
    %c0_58 = arith.constant 0 : index
    %c0_59 = arith.constant 0 : index
    %42 = vector.load %arg11[%c0_58, %c0_59] : memref<64x384xbf16, #tpu.memory_space<vmem>>, vector<64x384xbf16>
    %c384 = arith.constant 384 : index
    %c0_60 = arith.constant 0 : index
    %43 = vector.load %arg3[%c384, %c0_60] : memref<1152x128xbf16, #tpu.memory_space<vmem>>, vector<384x128xbf16>
    %cst_61 = arith.constant dense<0.000000e+00> : vector<64x128xf32>
    %44 = tpu.matmul %42, %43, %cst_61 {dimension_numbers = #tpu.dot_dimension_numbers<[1], [0], [0], [1], [0, 0, 1, 1], [], []>} : vector<64x384xbf16>, vector<384x128xbf16>, vector<64x128xf32> -> vector<64x128xf32>
    %c0_62 = arith.constant 0 : index
    %c0_63 = arith.constant 0 : index
    %45 = vector.load %arg12[%c0_62, %c0_63] : memref<64x128xf32, #tpu.memory_space<vmem>>, vector<64x128xf32>
    %46 = arith.addf %45, %44 : vector<64x128xf32>
    %c0_64 = arith.constant 0 : index
    %c0_65 = arith.constant 0 : index
    %47 = vector.load %arg12[%c0_64, %c0_65] : memref<64x128xf32, #tpu.memory_space<vmem>>, vector<64x128xf32>
    tpu.vector_store %arg12[%c0_64, %c0_65], %46 {strides = array<i32>} : memref<64x128xf32, #tpu.memory_space<vmem>>, vector<64x128xf32>,
    %c2_66 = arith.constant 2 : index
    %c0_67 = arith.constant 0 : index
    %c0_68 = arith.constant 0 : index
    %48 = vector.load %arg9[%c2_66, %c0_67, %c0_68] : memref<10x10x128xbf16, #tpu.memory_space<vmem>>, vector<8x8x128xbf16>
    %49 = vector.shape_cast %48 : vector<8x8x128xbf16> to vector<64x128xbf16>
    %c0_69 = arith.constant 0 : index
    %c0_70 = arith.constant 0 : index
    %50 = vector.load %arg10[%c0_69, %c0_70] : memref<64x384xbf16, #tpu.memory_space<vmem>>, vector<64x128xbf16>
    tpu.vector_store %arg10[%c0_69, %c0_70], %49 {strides = array<i32>} : memref<64x384xbf16, #tpu.memory_space<vmem>>, vector<64x128xbf16>,
    %c2_71 = arith.constant 2 : index
    %c1_72 = arith.constant 1 : index
    %c0_73 = arith.constant 0 : index
    %51 = vector.load %arg9[%c2_71, %c1_72, %c0_73] : memref<10x10x128xbf16, #tpu.memory_space<vmem>>, vector<8x8x128xbf16>
    %52 = vector.shape_cast %51 : vector<8x8x128xbf16> to vector<64x128xbf16>
    %c0_74 = arith.constant 0 : index
    %c128_75 = arith.constant 128 : index
    %53 = vector.load %arg10[%c0_74, %c128_75] : memref<64x384xbf16, #tpu.memory_space<vmem>>, vector<64x128xbf16>
    tpu.vector_store %arg10[%c0_74, %c128_75], %52 {strides = array<i32>} : memref<64x384xbf16, #tpu.memory_space<vmem>>, vector<64x128xbf16>,
    %c2_76 = arith.constant 2 : index
    %c2_77 = arith.constant 2 : index
    %c0_78 = arith.constant 0 : index
    %54 = vector.load %arg9[%c2_76, %c2_77, %c0_78] : memref<10x10x128xbf16, #tpu.memory_space<vmem>>, vector<8x8x128xbf16>
    %55 = vector.shape_cast %54 : vector<8x8x128xbf16> to vector<64x128xbf16>
    %c0_79 = arith.constant 0 : index
    %c256_80 = arith.constant 256 : index
    %56 = vector.load %arg10[%c0_79, %c256_80] : memref<64x384xbf16, #tpu.memory_space<vmem>>, vector<64x128xbf16>
    tpu.vector_store %arg10[%c0_79, %c256_80], %55 {strides = array<i32>} : memref<64x384xbf16, #tpu.memory_space<vmem>>, vector<64x128xbf16>,
    %c0_81 = arith.constant 0 : index
    %c0_82 = arith.constant 0 : index
    %57 = vector.load %arg10[%c0_81, %c0_82] : memref<64x384xbf16, #tpu.memory_space<vmem>>, vector<64x384xbf16>
    %c768 = arith.constant 768 : index
    %c0_83 = arith.constant 0 : index
    %58 = vector.load %arg3[%c768, %c0_83] : memref<1152x128xbf16, #tpu.memory_space<vmem>>, vector<384x128xbf16>
    %cst_84 = arith.constant dense<0.000000e+00> : vector<64x128xf32>
    %59 = tpu.matmul %57, %58, %cst_84 {dimension_numbers = #tpu.dot_dimension_numbers<[1], [0], [0], [1], [0, 0, 1, 1], [], []>} : vector<64x384xbf16>, vector<384x128xbf16>, vector<64x128xf32> -> vector<64x128xf32>
    %c0_85 = arith.constant 0 : index
    %c0_86 = arith.constant 0 : index
    %60 = vector.load %arg12[%c0_85, %c0_86] : memref<64x128xf32, #tpu.memory_space<vmem>>, vector<64x128xf32>
    %61 = arith.addf %60, %59 : vector<64x128xf32>
    %c0_87 = arith.constant 0 : index
    %c0_88 = arith.constant 0 : index
    %62 = vector.load %arg12[%c0_87, %c0_88] : memref<64x128xf32, #tpu.memory_space<vmem>>, vector<64x128xf32>
    tpu.vector_store %arg12[%c0_87, %c0_88], %61 {strides = array<i32>} : memref<64x128xf32, #tpu.memory_space<vmem>>, vector<64x128xf32>,
    %c0_89 = arith.constant 0 : index
    %c0_90 = arith.constant 0 : index
    %63 = vector.load %arg12[%c0_89, %c0_90] : memref<64x128xf32, #tpu.memory_space<vmem>>, vector<64x128xf32>
    %c0_91 = arith.constant 0 : index
    %c0_92 = arith.constant 0 : index
    %64 = vector.load %arg6[%c0_91, %c0_92] : memref<1x128xf32, #tpu.memory_space<vmem>>, vector<1x128xf32>
    %65 = vector.broadcast %64 : vector<1x128xf32> to vector<64x128xf32>
    %66 = arith.addf %63, %65 : vector<64x128xf32>
    %cst_93 = arith.constant 0.000000e+00 : f32
    %67 = vector.broadcast %cst_93 : f32 to vector<64x128xf32>
    %68 = arith.maximumf %66, %67 : vector<64x128xf32>
    %69 = arith.truncf %68 : vector<64x128xf32> to vector<64x128xbf16>
    %c0_94 = arith.constant 0 : index
    %c0_95 = arith.constant 0 : index
    %70 = vector.load %arg4[%c0_94, %c0_95] : memref<128x16xbf16, #tpu.memory_space<vmem>>, vector<128x16xbf16>
    %cst_96 = arith.constant dense<0.000000e+00> : vector<64x16xf32>
    %71 = tpu.matmul %69, %70, %cst_96 {dimension_numbers = #tpu.dot_dimension_numbers<[1], [0], [0], [1], [0, 0, 1, 1], [], []>} : vector<64x128xbf16>, vector<128x16xbf16>, vector<64x16xf32> -> vector<64x16xf32>
    %c0_97 = arith.constant 0 : index
    %c0_98 = arith.constant 0 : index
    %72 = vector.load %arg7[%c0_97, %c0_98] : memref<1x16xf32, #tpu.memory_space<vmem>>, vector<1x16xf32>
    %73 = vector.broadcast %72 : vector<1x16xf32> to vector<64x16xf32>
    %74 = arith.addf %71, %73 : vector<64x16xf32>
    %c0_99 = arith.constant 0 : index
    %c0_100 = arith.constant 0 : index
    %c0_101 = arith.constant 0 : index
    %75 = vector.load %arg1[%c0_99, %c0_100, %c0_101] : memref<1x64x16xbf16, #tpu.memory_space<vmem>>, vector<1x64x16xbf16>
    %76 = vector.shape_cast %75 : vector<1x64x16xbf16> to vector<64x16xbf16>
    %77 = arith.extf %76 : vector<64x16xbf16> to vector<64x16xf32>
    %78 = arith.addf %74, %77 : vector<64x16xf32>
    %cst_102 = arith.constant 0.000000e+00 : f32
    %79 = vector.broadcast %cst_102 : f32 to vector<64x16xf32>
    %80 = arith.maximumf %78, %79 : vector<64x16xf32>
    %81 = arith.truncf %80 : vector<64x16xf32> to vector<64x16xbf16>
    %c0_103 = arith.constant 0 : index
    %c0_104 = arith.constant 0 : index
    %c0_105 = arith.constant 0 : index
    %82 = vector.load %arg8[%c0_103, %c0_104, %c0_105] : memref<1x64x16xbf16, #tpu.memory_space<vmem>>, vector<1x64x16xbf16>
    %83 = vector.shape_cast %82 : vector<1x64x16xbf16> to vector<64x16xbf16>
    %84 = vector.shape_cast %81 : vector<64x16xbf16> to vector<1x64x16xbf16>
    tpu.vector_store %arg8[%c0_103, %c0_104, %c0_105], %84 {strides = array<i32>} : memref<1x64x16xbf16, #tpu.memory_space<vmem>>, vector<1x64x16xbf16>,
    return
  }
  func.func @transform_0(%arg0: i32) -> (i32, i32, i32) {
    %c0_i32 = arith.constant 0 : i32
    %c0_i32_0 = arith.constant 0 : i32
    %c0_i32_1 = arith.constant 0 : i32
    return %arg0, %c0_i32, %c0_i32_0 : i32, i32, i32
  }
  func.func @transform_1(%arg0: i32) -> (i32, i32) {
    %c0_i32 = arith.constant 0 : i32
    %c0_i32_0 = arith.constant 0 : i32
    %c0_i32_1 = arith.constant 0 : i32
    return %c0_i32, %c0_i32_0 : i32, i32
  }
  func.func @transform_2(%arg0: i32) -> (i32, i32) {
    %c0_i32 = arith.constant 0 : i32
    %c0_i32_0 = arith.constant 0 : i32
    %c0_i32_1 = arith.constant 0 : i32
    return %c0_i32, %c0_i32_0 : i32, i32
  }
  func.func @transform_3(%arg0: i32) -> (i32, i32) {
    %c0_i32 = arith.constant 0 : i32
    %c0_i32_0 = arith.constant 0 : i32
    %c0_i32_1 = arith.constant 0 : i32
    return %c0_i32, %c0_i32_0 : i32, i32
  }
  func.func @transform_4(%arg0: i32) -> (i32, i32) {
    %c0_i32 = arith.constant 0 : i32
    %c0_i32_0 = arith.constant 0 : i32
    %c0_i32_1 = arith.constant 0 : i32
    return %c0_i32, %c0_i32_0 : i32, i32
  }
  func.func @transform_5(%arg0: i32) -> (i32, i32) {
    %c0_i32 = arith.constant 0 : i32
    %c0_i32_0 = arith.constant 0 : i32
    %c0_i32_1 = arith.constant 0 : i32
    return %c0_i32, %c0_i32_0 : i32, i32
  }
  func.func @transform_6(%arg0: i32) -> (i32, i32) {
    %c0_i32 = arith.constant 0 : i32
    %c0_i32_0 = arith.constant 0 : i32
    %c0_i32_1 = arith.constant 0 : i32
    return %c0_i32, %c0_i32_0 : i32, i32
  }
  func.func @transform_7(%arg0: i32) -> (i32, i32, i32) {
    %c0_i32 = arith.constant 0 : i32
    %c0_i32_0 = arith.constant 0 : i32
    %c0_i32_1 = arith.constant 0 : i32
    return %arg0, %c0_i32, %c0_i32_0 : i32, i32, i32
  }
}

</mosaic_0001>

<llo_original>
// kernel: tpu_custom_call.1
$region0: #{tpu_custom_call.1}
  #allocation0 [shape = 'u32[]', space=smem, size = 0x4, offset = 0x4, fixed_abs, tag = 'smem constant byte address 0x4 - core index']
  #allocation1 [shape = 'u32[144,128]{1,0:T(1,128)}', space=vmem, size = 0x12000, scoped, tag = 'internal scratch']
  #allocation2 [shape = 'bf16[10,10,128]{2,1,0:T(8,128)(2,1)}', space=vmem, size = 0xa000, scoped, tag = 'scratch operand']
  #allocation3 [shape = 'bf16[64,384]{1,0:T(8,128)(2,1)}', space=vmem, size = 0xc000, scoped, tag = 'scratch operand']
  #allocation4 [shape = 'bf16[64,384]{1,0:T(8,128)(2,1)}', space=vmem, size = 0xc000, scoped, tag = 'scratch operand']
  #allocation5 [shape = 'f32[64,128]{1,0:T(8,128)}', space=vmem, size = 0x8000, scoped, tag = 'scratch operand']
  %s0 = inlined_call_operand.vmem [shape: bf16[2,64,16], index: 0, kind: input, shape index: {}]
  %s1 = inlined_call_operand.vmem [shape: bf16[16,128], index: 1, kind: input, shape index: {}]
  %s2 = inlined_call_operand.hbm [shape: bf16[1152,128], index: 2, kind: input, shape index: {}]
  %s3 = inlined_call_operand.vmem [shape: bf16[128,16], index: 3, kind: input, shape index: {}]
  %s4 = inlined_call_operand.vmem [shape: f32[1,128], index: 4, kind: input, shape index: {}]
  %s5 = inlined_call_operand.vmem [shape: f32[1,128], index: 5, kind: input, shape index: {}]
  %s6 = inlined_call_operand.vmem [shape: f32[1,16], index: 6, kind: input, shape index: {}]
  %s7 = inlined_call_operand.vmem [shape: bf16[2,64,16], index: 7, kind: output, shape index: {}]
  %s8 = sld [smem:[#allocation0]]
  $region65: #{tpu_custom_call.1} parent=0
    _
  %s10 = ssub.s32 1, %s8
  %s11 = scalar_select 0, %s10, %s8
  $region1: #{tpu_custom_call.1} parent=0
    #allocation6 [shape = 'u8[294912]{0}', space=vmem, size = 0x48000, scoped, tag = 'input window, operand 2, single buffered']
    #allocation7 [shape = 's32[2]{0}', space=sflag, size = 0x8, scoped, tag = 'scoped memory for tpu_custom_call.1']
    %12 = vsyncpa [#allocation7], 0
    loop: start=0, step=1, limit=4
    $region2: #{tpu_custom_call.1} parent=1 // loop_pre_header
      _
    $region3: #{tpu_custom_call.1} parent=1 // loop_header
      %s14 = sphi 0, %s18
      %p15 = scmp.ge.s32.totalorder %s14, 4
      %s24 = sphi 0, %s26
      %s27 = sphi 0, %s24
      %s28 = sphi 0, %s27
      %s44 = sphi 0, %s28
      %s48 = sphi 0, %s48
      %s50 = sphi 0, %s48
      %s51 = sphi 0, %s50
      %s65 = sphi 0, %s51
      %s69 = sphi 0, %s69
      %s71 = sphi 0, %s69
      %s72 = sphi 0, %s71
      %s86 = sphi 0, %s72
      %s90 = sphi 0, %s90
      %s92 = sphi 0, %s90
      %s93 = sphi 0, %s92
      %s107 = sphi 0, %s93
      %s111 = sphi 0, %s111
      %s113 = sphi 0, %s111
      %s114 = sphi 0, %s113
      %s128 = sphi 0, %s114
      %s132 = sphi 0, %s132
      %s134 = sphi 0, %s132
      %s135 = sphi 0, %s134
      %s149 = sphi 0, %s135
      %s153 = sphi 0, %s153
      %s155 = sphi 0, %s153
      %s156 = sphi 0, %s155
      %s170 = sphi 0, %s156
      %s176 = sphi 0, %s178
      %s179 = sphi 0, %s176
      %s180 = sphi 0, %s179
      %s196 = sphi 0, %s180
    $region4: #{tpu_custom_call.1} parent=1 // loop_header_branch
      %17 = sbr.rel (%p15) target = $region8
    $region5: #{tpu_custom_call.1} parent=1 // loop_body
      %s19 = ssub.s32 %s14, 1
      %s20 = ssub.s32 %s14, 2
      %s21 = sadd.s32 %s14, 1
      %s22 = ssub.s32 %s14, %s21
      %p23 = scmp.eq.s32.totalorder %s22, 0
      %s25 = sadd.s32 %s24, 1
      %s26 = scalar_select %p23, %s24, %s25
      %p29 = pneg %p23
      %p30 = scmp.eq.s32.totalorder %s14, 1
      %p31 = por %p29, %p30
      %p32 = scmp.ne.s32.totalorder %s24, %s27
      %p33 = scmp.eq.s32.totalorder %s14, 0
      %p34 = por %p32, %p33
      %p35 = scmp.ne.s32.totalorder %s24, %s27
      %p36 = scmp.eq.s32.totalorder %s19, 1
      %p37 = por %p35, %p36
      %p38 = scmp.ne.s32.totalorder %s27, %s28
      %p39 = scmp.eq.s32.totalorder %s19, 0
      %p40 = por %p38, %p39
      %p41 = scmp.ne.s32.totalorder %s27, %s28
      %p42 = scmp.eq.s32.totalorder %s20, 1
      %p43 = por %p41, %p42
      %p45 = scmp.ne.s32.totalorder %s28, %s44
      %p46 = scmp.eq.s32.totalorder %s20, 0
      %p47 = por %p45, %p46
      %s49 = sadd.s32 %s48, 1
      %p52 = scmp.eq.s32.totalorder %s14, 1
      %p53 = scmp.ne.s32.totalorder %s48, %s50
      %p54 = scmp.eq.s32.totalorder %s14, 0
      %p55 = por %p53, %p54
      %p56 = scmp.ne.s32.totalorder %s48, %s50
      %p57 = scmp.eq.s32.totalorder %s19, 1
      %p58 = por %p56, %p57
      %p59 = scmp.ne.s32.totalorder %s50, %s51
      %p60 = scmp.eq.s32.totalorder %s19, 0
      %p61 = por %p59, %p60
      %p62 = scmp.ne.s32.totalorder %s50, %s51
      %p63 = scmp.eq.s32.totalorder %s20, 1
      %p64 = por %p62, %p63
      %p66 = scmp.ne.s32.totalorder %s51, %s65
      %p67 = scmp.eq.s32.totalorder %s20, 0
      %p68 = por %p66, %p67
      %s70 = sadd.s32 %s69, 1
      %p73 = scmp.eq.s32.totalorder %s14, 1
      %p74 = scmp.ne.s32.totalorder %s69, %s71
      %p75 = scmp.eq.s32.totalorder %s14, 0
      %p76 = por %p74, %p75
      %p77 = scmp.ne.s32.totalorder %s69, %s71
      %p78 = scmp.eq.s32.totalorder %s19, 1
      %p79 = por %p77, %p78
      %p80 = scmp.ne.s32.totalorder %s71, %s72
      %p81 = scmp.eq.s32.totalorder %s19, 0
      %p82 = por %p80, %p81
      %p83 = scmp.ne.s32.totalorder %s71, %s72
      %p84 = scmp.eq.s32.totalorder %s20, 1
      %p85 = por %p83, %p84
      %p87 = scmp.ne.s32.totalorder %s72, %s86
      %p88 = scmp.eq.s32.totalorder %s20, 0
      %p89 = por %p87, %p88
      %s91 = sadd.s32 %s90, 1
      %p94 = scmp.eq.s32.totalorder %s14, 1
      %p95 = scmp.ne.s32.totalorder %s90, %s92
      %p96 = scmp.eq.s32.totalorder %s14, 0
      %p97 = por %p95, %p96
      %p98 = scmp.ne.s32.totalorder %s90, %s92
      %p99 = scmp.eq.s32.totalorder %s19, 1
      %p100 = por %p98, %p99
      %p101 = scmp.ne.s32.totalorder %s92, %s93
      %p102 = scmp.eq.s32.totalorder %s19, 0
      %p103 = por %p101, %p102
      %p104 = scmp.ne.s32.totalorder %s92, %s93
      %p105 = scmp.eq.s32.totalorder %s20, 1
      %p106 = por %p104, %p105
      %p108 = scmp.ne.s32.totalorder %s93, %s107
      %p109 = scmp.eq.s32.totalorder %s20, 0
      %p110 = por %p108, %p109
      %s112 = sadd.s32 %s111, 1
      %p115 = scmp.eq.s32.totalorder %s14, 1
      %p116 = scmp.ne.s32.totalorder %s111, %s113
      %p117 = scmp.eq.s32.totalorder %s14, 0
      %p118 = por %p116, %p117
      %p119 = scmp.ne.s32.totalorder %s111, %s113
      %p120 = scmp.eq.s32.totalorder %s19, 1
      %p121 = por %p119, %p120
      %p122 = scmp.ne.s32.totalorder %s113, %s114
      %p123 = scmp.eq.s32.totalorder %s19, 0
      %p124 = por %p122, %p123
      %p125 = scmp.ne.s32.totalorder %s113, %s114
      %p126 = scmp.eq.s32.totalorder %s20, 1
      %p127 = por %p125, %p126
      %p129 = scmp.ne.s32.totalorder %s114, %s128
      %p130 = scmp.eq.s32.totalorder %s20, 0
      %p131 = por %p129, %p130
      %s133 = sadd.s32 %s132, 1
      %p136 = scmp.eq.s32.totalorder %s14, 1
      %p137 = scmp.ne.s32.totalorder %s132, %s134
      %p138 = scmp.eq.s32.totalorder %s14, 0
      %p139 = por %p137, %p138
      %p140 = scmp.ne.s32.totalorder %s132, %s134
      %p141 = scmp.eq.s32.totalorder %s19, 1
      %p142 = por %p140, %p141
      %p143 = scmp.ne.s32.totalorder %s134, %s135
      %p144 = scmp.eq.s32.totalorder %s19, 0
      %p145 = por %p143, %p144
      %p146 = scmp.ne.s32.totalorder %s134, %s135
      %p147 = scmp.eq.s32.totalorder %s20, 1
      %p148 = por %p146, %p147
      %p150 = scmp.ne.s32.totalorder %s135, %s149
      %p151 = scmp.eq.s32.totalorder %s20, 0
      %p152 = por %p150, %p151
      %s154 = sadd.s32 %s153, 1
      %p157 = scmp.eq.s32.totalorder %s14, 1
      %p158 = scmp.ne.s32.totalorder %s153, %s155
      %p159 = scmp.eq.s32.totalorder %s14, 0
      %p160 = por %p158, %p159
      %p161 = scmp.ne.s32.totalorder %s153, %s155
      %p162 = scmp.eq.s32.totalorder %s19, 1
      %p163 = por %p161, %p162
      %p164 = scmp.ne.s32.totalorder %s155, %s156
      %p165 = scmp.eq.s32.totalorder %s19, 0
      %p166 = por %p164, %p165
      %p167 = scmp.ne.s32.totalorder %s155, %s156
      %p168 = scmp.eq.s32.totalorder %s20, 1
      %p169 = por %p167, %p168
      %p171 = scmp.ne.s32.totalorder %s156, %s170
      %p172 = scmp.eq.s32.totalorder %s20, 0
      %p173 = por %p171, %p172
      %s174 = ssub.s32 %s14, %s21
      %p175 = scmp.eq.s32.totalorder %s174, 0
      %s177 = sadd.s32 %s176, 1
      %s178 = scalar_select %p175, %s176, %s177
      %p181 = pneg %p175
      %p182 = scmp.eq.s32.totalorder %s14, 1
      %p183 = por %p181, %p182
      %p184 = scmp.ne.s32.totalorder %s176, %s179
      %p185 = scmp.eq.s32.totalorder %s14, 0
      %p186 = por %p184, %p185
      %p187 = scmp.ne.s32.totalorder %s176, %s179
      %p188 = scmp.eq.s32.totalorder %s19, 1
      %p189 = por %p187, %p188
      %p190 = scmp.ne.s32.totalorder %s179, %s180
      %p191 = scmp.eq.s32.totalorder %s19, 0
      %p192 = por %p190, %p191
      %p193 = scmp.ne.s32.totalorder %s179, %s180
      %p194 = scmp.eq.s32.totalorder %s20, 1
      %p195 = por %p193, %p194
      %p197 = scmp.ne.s32.totalorder %s180, %s196
      %p198 = scmp.eq.s32.totalorder %s20, 0
      %p199 = por %p197, %p198
      %p200 = scmp.le.s32.totalorder 1, %s14
      %p201 = scmp.lt.s32.totalorder %s14, 3
      %p202 = pnand %p200, %p201
      %p203 = pneg %p202
      // Predicated region
      $region9: #{tpu_custom_call.1} parent=5 // pred_check
        _
      $region10: #{tpu_custom_call.1} parent=5 // pred_check_branch
        %205 = sbr.rel (%p202) target = $region12
      $region11: #{tpu_custom_call.1} parent=5 // pred_region
        %s206 = ssub.s32 %s14, 1
        // Predicated region
        $region13: #{tpu_custom_call.1} parent=11 // pred_check
          %p207 = pneg %p61
        $region14: #{tpu_custom_call.1} parent=11 // pred_check_branch
          %209 = sbr.rel (%p207) target = $region16
        $region15: #{tpu_custom_call.1} parent=11 // pred_region
          _
        $region16: #{tpu_custom_call.1} parent=11 // pred_fallthru
          _
        // Predicated region
        $region17: #{tpu_custom_call.1} parent=11 // pred_check
          %p210 = pneg %p82
        $region18: #{tpu_custom_call.1} parent=11 // pred_check_branch
          %212 = sbr.rel (%p210) target = $region20
        $region19: #{tpu_custom_call.1} parent=11 // pred_region
          %s214 = ssub.s32 9216, 9216
          %215 = vsyncadd [#allocation7], %s214
          %s216 = sshll.u32 [#allocation6], 4
          %s217 = int_to_ptr.vmem [resolvable:$true] %s216
          %222 = dma.hbm_to_vmem [thread:$0]  %s2, 9216, %s217, [#allocation7], 64, 64, 4
        $region20: #{tpu_custom_call.1} parent=11 // pred_fallthru
          _
        // Predicated region
        $region21: #{tpu_custom_call.1} parent=11 // pred_check
          %p223 = pneg %p103
        $region22: #{tpu_custom_call.1} parent=11 // pred_check_branch
          %225 = sbr.rel (%p223) target = $region24
        $region23: #{tpu_custom_call.1} parent=11 // pred_region
          _
        $region24: #{tpu_custom_call.1} parent=11 // pred_fallthru
          _
        // Predicated region
        $region25: #{tpu_custom_call.1} parent=11 // pred_check
          %p226 = pneg %p124
        $region26: #{tpu_custom_call.1} parent=11 // pred_check_branch
          %228 = sbr.rel (%p226) target = $region28
        $region27: #{tpu_custom_call.1} parent=11 // pred_region
          _
        $region28: #{tpu_custom_call.1} parent=11 // pred_fallthru
          _
        // Predicated region
        $region29: #{tpu_custom_call.1} parent=11 // pred_check
          %p229 = pneg %p145
        $region30: #{tpu_custom_call.1} parent=11 // pred_check_branch
          %231 = sbr.rel (%p229) target = $region32
        $region31: #{tpu_custom_call.1} parent=11 // pred_region
          _
        $region32: #{tpu_custom_call.1} parent=11 // pred_fallthru
          _
        // Predicated region
        $region33: #{tpu_custom_call.1} parent=11 // pred_check
          %p232 = pneg %p166
        $region34: #{tpu_custom_call.1} parent=11 // pred_check_branch
          %234 = sbr.rel (%p232) target = $region36
        $region35: #{tpu_custom_call.1} parent=11 // pred_region
          _
        $region36: #{tpu_custom_call.1} parent=11 // pred_fallthru
          _
      $region12: #{tpu_custom_call.1} parent=5 // pred_fallthru
        _
      %p235 = scmp.lt.s32.totalorder %s14, 2
      // Predicated region
      $region37: #{tpu_custom_call.1} parent=5 // pred_check
        %p236 = pneg %p235
      $region38: #{tpu_custom_call.1} parent=5 // pred_check_branch
        %238 = sbr.rel (%p236) target = $region40
      $region39: #{tpu_custom_call.1} parent=5 // pred_region
        // Predicated region
        $region41: #{tpu_custom_call.1} parent=39 // pred_check
          %p239 = pneg %p34
        $region42: #{tpu_custom_call.1} parent=39 // pred_check_branch
          %241 = sbr.rel (%p239) target = $region44
        $region43: #{tpu_custom_call.1} parent=39 // pred_region
          %p242 = scmp.lt.s32.totalorder %s14, 1
          %s243 = scalar_select %p242, %s14, 1
          %s244 = smul.addr %s243, 8
          %s245 = smul.addr %s244, 4
          %s246 = scalar_lea.vmem %s0, %s245
        $region44: #{tpu_custom_call.1} parent=39 // pred_fallthru
          _
      $region40: #{tpu_custom_call.1} parent=5 // pred_fallthru
        _
      %p247 = scmp.le.s32.totalorder 1, %s14
      %p248 = scmp.lt.s32.totalorder %s14, 3
      %p249 = pnand %p247, %p248
      %p250 = pneg %p249
      // Predicated region
      $region45: #{tpu_custom_call.1} parent=5 // pred_check
        _
      $region46: #{tpu_custom_call.1} parent=5 // pred_check_branch
        %252 = sbr.rel (%p249) target = $region48
      $region47: #{tpu_custom_call.1} parent=5 // pred_region
        %s253 = ssub.s32 %s14, 1
        // Predicated region
        $region49: #{tpu_custom_call.1} parent=47 // pred_check
          %p254 = pneg %p82
        $region50: #{tpu_custom_call.1} parent=47 // pred_check_branch
          %256 = sbr.rel (%p254) target = $region52
        $region51: #{tpu_custom_call.1} parent=47 // pred_region
          %257 = dma.done [#allocation7], 9216
        $region52: #{tpu_custom_call.1} parent=47 // pred_fallthru
          _
        %p258 = scmp.lt.s32.totalorder %s19, 1
        %s259 = scalar_select %p258, %s19, 1
        %s260 = smul.addr %s259, 8
        %s261 = smul.addr %s260, 4
        %s262 = scalar_lea.vmem %s0, %s261
        %p263 = pneg %p40
        %p264 = pneg %p37
        %p265 = pneg %p61
        %p266 = pneg %p58
        %p267 = pneg %p82
        %p268 = pneg %p79
        %p269 = pneg %p103
        %p270 = pneg %p100
        %p271 = pneg %p124
        %p272 = pneg %p121
        %p273 = pneg %p145
        %p274 = pneg %p142
        %p275 = pneg %p166
        %p276 = pneg %p163
        %p277 = pneg %p192
        %p278 = pneg %p189
        %p279 = scmp.lt.s32.totalorder %s19, 1
        %s280 = scalar_select %p279, %s19, 1
        %s281 = smul.addr %s280, 8
        %s282 = smul.addr %s281, 4
        %s283 = scalar_lea.vmem %s7, %s282
        %p284 = scmp.lt.s32.totalorder %s19, 1
        %s285 = scalar_select %p284, %s19, 1
        %s286 = smul.addr %s285, 8
        %s287 = smul.addr %s286, 4
        %s288 = scalar_lea.vmem %s0, %s287
        %p289 = scmp.lt.s32.totalorder %s19, 1
        %s290 = scalar_select %p289, %s19, 1
        %s291 = smul.addr %s290, 8
        %s292 = smul.addr %s291, 4
        %s293 = scalar_lea.vmem %s7, %s292
        %v295 = vld [vmem:[%s288] sm:$0xf]
        %v296 = vld [vmem:[%s288 + $0x4] sm:$0xf]
        %v297 = vld [vmem:[%s288 + $0x8] sm:$0xf]
        %v298 = vld [vmem:[%s288 + $0xc] sm:$0xf]
        %v299 = vld [vmem:[%s288 + $0x10] sm:$0xf]
        %v300 = vld [vmem:[%s288 + $0x14] sm:$0xf]
        %v301 = vld [vmem:[%s288 + $0x18] sm:$0xf]
        %v302 = vld [vmem:[%s288 + $0x1c] sm:$0xf]
        %v303 = vld [vmem:[%s1] sm:$0xf]
        %v304 = vld [vmem:[%s1 + $0x4] sm:$0xf]
        %v305 = vld [vmem:[%s4] sm:$0x1]
        %v307 = vlaneseq
        %v308 = vshrl.u32 %v307, 7
        %v309 = vsub.s32 0, %v308
        %v310 = vrot.slane %v305, %v309
        %v320 = vunpack.c.l.b16 %v295
        %v321 = vunpack.c.l.b16 %v296
        %v322 = vunpack.c.l.b16 %v297
        %v323 = vunpack.c.l.b16 %v298
        %v324 = vunpack.c.l.b16 %v299
        %v325 = vunpack.c.l.b16 %v300
        %v326 = vunpack.c.l.b16 %v301
        %v327 = vunpack.c.l.b16 %v302
        %v328 = vpack.c.b16 %v321, %v320
        %v329 = vpack.c.b16 %v323, %v322
        %v330 = vpack.c.b16 %v325, %v324
        %v331 = vpack.c.b16 %v327, %v326
        %v334 = vunpack.c.l.b16 %v303
        %v335 = vunpack.c.l.b16 %v304
        %v336 = vpack.c.b16 %v335, %v334
        %vm338 = vcmask 130048
        %v340 = vsel %vm338, %v328, 0
        %v343 = vsel %vm338, %v329, 0
        %v346 = vsel %vm338, %v330, 0
        %v349 = vsel %vm338, %v331, 0
        %351 = vmatprep.subr.bf16.mxu0 0
        %352 = vmatpush1.bf16.msra.mxu0 0
        %353 = vmatprep.subr.bf16.mxu0 0
        %354 = vmatpush1.bf16.msra.mxu0 0
        %355 = vmatprep.subr.bf16.mxu0 0
        %356 = vmatpush1.bf16.msra.mxu0 0
        %357 = vmatprep.subr.bf16.mxu0 0
        %358 = vmatpush1.bf16.msra.mxu0 0
        %359 = vmatprep.subr.bf16.mxu0 0
        %360 = vmatpush1.bf16.msra.mxu0 0
        %361 = vmatprep.subr.bf16.mxu0 0
        %362 = vmatpush1.bf16.msra.mxu0 0
        %363 = vmatprep.subr.bf16.mxu0 0
        %364 = vmatpush1.bf16.msra.mxu0 0
        %365 = vmatprep.subr.bf16.mxu0 0
        %366 = vmatpush1.bf16.msra.mxu0 %v336
        %367 = vmatprep.subr.bf16.mxu0 0
        %368 = vmatpush2.bf16.msra.mxu0 0
        %369 = vmatprep.subr.bf16.mxu0 0
        %370 = vmatpush2.bf16.msra.mxu0 0
        %371 = vmatprep.subr.bf16.mxu0 0
        %372 = vmatpush2.bf16.msra.mxu0 0
        %373 = vmatprep.subr.bf16.mxu0 0
        %374 = vmatpush2.bf16.msra.mxu0 0
        %375 = vmatprep.subr.bf16.mxu0 0
        %376 = vmatpush2.bf16.msra.mxu0 0
        %377 = vmatprep.subr.bf16.mxu0 0
        %378 = vmatpush2.bf16.msra.mxu0 0
        %379 = vmatprep.subr.bf16.mxu0 0
        %380 = vmatpush2.bf16.msra.mxu0 0
        %381 = vmatprep.subr.bf16.mxu0 0
        %382 = vmatpush2.bf16.msra.mxu0 0
        %383 = vmatprep.mubr.bf16.mxu0 0
        %384 = vmatmul.mubr.bf16.gmra.mxu0 %v340
        %v385 = vpop.f32.mrf.mxu0
        %v386 = vadd.f32 %v310, %v385
        %v387 = vpop.f32.mrf.mxu0
        %v388 = vpop.f32.mrf.mxu0
        %v389 = vadd.f32 %v310, %v388
        %v390 = vpop.f32.mrf.mxu0
        %391 = vmatprep.mubr.bf16.mxu0 0
        %392 = vmatmul.mubr.bf16.gmra.mxu0 %v343
        %v393 = vpop.f32.mrf.mxu0
        %v394 = vadd.f32 %v310, %v393
        %v395 = vpop.f32.mrf.mxu0
        %v396 = vpop.f32.mrf.mxu0
        %v397 = vadd.f32 %v310, %v396
        %v398 = vpop.f32.mrf.mxu0
        %399 = vmatprep.mubr.bf16.mxu0 0
        %400 = vmatmul.mubr.bf16.gmra.mxu0 %v346
        %v401 = vpop.f32.mrf.mxu0
        %v402 = vadd.f32 %v310, %v401
        %v403 = vpop.f32.mrf.mxu0
        %v404 = vpop.f32.mrf.mxu0
        %v405 = vadd.f32 %v310, %v404
        %v406 = vpop.f32.mrf.mxu0
        %407 = vmatprep.mubr.bf16.mxu0 0
        %408 = vmatmul.mubr.bf16.gmra.mxu0 %v349
        %v409 = vpop.f32.mrf.mxu0
        %v410 = vadd.f32 %v310, %v409
        %v411 = vpop.f32.mrf.mxu0
        %v412 = vpop.f32.mrf.mxu0
        %v413 = vadd.f32 %v310, %v412
        %v414 = vpop.f32.mrf.mxu0
        %415 = vdwg.mxu0
        %v416 = vmax.f32 %v386, 0.0
        %v417 = vmax.f32 %v389, 0.0
        %v418 = vmax.f32 %v394, 0.0
        %v419 = vmax.f32 %v397, 0.0
        %v420 = vmax.f32 %v402, 0.0
        %v421 = vmax.f32 %v405, 0.0
        %v422 = vmax.f32 %v410, 0.0
        %v423 = vmax.f32 %v413, 0.0
        %v424 = vpack.c.bf16 %v417, %v416
        %v425 = vpack.c.bf16 %v419, %v418
        %v426 = vpack.c.bf16 %v421, %v420
        %v427 = vpack.c.bf16 %v423, %v422
        %428 = vst [vmem:[#allocation2] sm:$0xf] 0
        %429 = vst [vmem:[#allocation2 + $0x4] sm:$0x1] 0
        %s430 = scalar_lea.vmem [#allocation2], 72
        %431 = vst [vmem:[%s430] sm:$0xf] 0
        %432 = vst [vmem:[%s430 + $0x4] sm:$0x1] 0
        %s433 = scalar_lea.vmem [#allocation2], 8
        %vm434 = vcmask 1040384
        %vm435 = vsmask.f32 256
        %vm436 = vmand %vm434, %vm435
        %v437 = vld [vmem:[%s433] sm:$0x1]
        %v438 = vsel %vm436, 0, %v437
        %439 = vst [vmem:[%s433] sm:$0x1] %v438
        %v440 = vld [vmem:[%s433 + $0x8] sm:$0x1]
        %v441 = vsel %vm436, 0, %v440
        %442 = vst [vmem:[%s433 + $0x8] sm:$0x1] %v441
        %v443 = vld [vmem:[%s433 + $0x10] sm:$0x1]
        %v444 = vsel %vm436, 0, %v443
        %445 = vst [vmem:[%s433 + $0x10] sm:$0x1] %v444
        %v446 = vld [vmem:[%s433 + $0x18] sm:$0x1]
        %v447 = vsel %vm436, 0, %v446
        %448 = vst [vmem:[%s433 + $0x18] sm:$0x1] %v447
        %v449 = vld [vmem:[%s433 + $0x20] sm:$0x1]
        %v450 = vsel %vm436, 0, %v449
        %451 = vst [vmem:[%s433 + $0x20] sm:$0x1] %v450
        %v452 = vld [vmem:[%s433 + $0x28] sm:$0x1]
        %v453 = vsel %vm436, 0, %v452
        %454 = vst [vmem:[%s433 + $0x28] sm:$0x1] %v453
        %v455 = vld [vmem:[%s433 + $0x30] sm:$0x1]
        %v456 = vsel %vm436, 0, %v455
        %457 = vst [vmem:[%s433 + $0x30] sm:$0x1] %v456
        %v458 = vld [vmem:[%s433 + $0x38] sm:$0x1]
        %v459 = vsel %vm436, 0, %v458
        %460 = vst [vmem:[%s433 + $0x38] sm:$0x1] %v459
        %vm461 = vsmask.f32 7938
        %vm462 = vmand %vm434, %vm461
        %v463 = vld [vmem:[%s433 + $0x4] sm:$0x1]
        %v464 = vsel %vm462, 0, %v463
        %465 = vst [vmem:[%s433 + $0x4] sm:$0x1] %v464
        %v466 = vld [vmem:[%s433 + $0xc] sm:$0x1]
        %v467 = vsel %vm462, 0, %v466
        %468 = vst [vmem:[%s433 + $0xc] sm:$0x1] %v467
        %v469 = vld [vmem:[%s433 + $0x14] sm:$0x1]
        %v470 = vsel %vm462, 0, %v469
        %471 = vst [vmem:[%s433 + $0x14] sm:$0x1] %v470
        %v472 = vld [vmem:[%s433 + $0x1c] sm:$0x1]
        %v473 = vsel %vm462, 0, %v472
        %474 = vst [vmem:[%s433 + $0x1c] sm:$0x1] %v473
        %v475 = vld [vmem:[%s433 + $0x24] sm:$0x1]
        %v476 = vsel %vm462, 0, %v475
        %477 = vst [vmem:[%s433 + $0x24] sm:$0x1] %v476
        %v478 = vld [vmem:[%s433 + $0x2c] sm:$0x1]
        %v479 = vsel %vm462, 0, %v478
        %480 = vst [vmem:[%s433 + $0x2c] sm:$0x1] %v479
        %v481 = vld [vmem:[%s433 + $0x34] sm:$0x1]
        %v482 = vsel %vm462, 0, %v481
        %483 = vst [vmem:[%s433 + $0x34] sm:$0x1] %v482
        %v484 = vld [vmem:[%s433 + $0x3c] sm:$0x1]
        %v485 = vsel %vm462, 0, %v484
        %486 = vst [vmem:[%s433 + $0x3c] sm:$0x1] %v485
        %v491 = vunpack.c.l.b16 %v424
        %v492 = vunpack.c.h.b16 %v424
        %v493 = vunpack.c.l.b16 %v425
        %v494 = vunpack.c.h.b16 %v425
        %v495 = vunpack.c.l.b16 %v426
        %v496 = vunpack.c.h.b16 %v426
        %v497 = vunpack.c.l.b16 %v427
        %v498 = vunpack.c.h.b16 %v427
        %v499 = vpack.c.b16 %v491, %v491
        %v500 = vpack.c.b16 %v492, %v492
        %v501 = vpack.c.b16 %v493, %v493
        %v502 = vpack.c.b16 %v494, %v494
        %v503 = vpack.c.b16 %v495, %v495
        %v504 = vpack.c.b16 %v496, %v496
        %v505 = vpack.c.b16 %v497, %v497
        %v506 = vpack.c.b16 %v498, %v498
        %v508 = vshrl.u32 %v499, 16
        %v510 = vrot.slane %v508, 7
        %v511 = vshll.u32 %v499, 16
        %v513 = vor.u32 %v510, %v511
        %v514 = vrot.slane %v510, 4
        %v516 = vshrl.u32 %v500, 16
        %v518 = vrot.slane %v516, 7
        %v519 = vshll.u32 %v500, 16
        %v521 = vor.u32 %v518, %v519
        %v522 = vrot.slane %v518, 4
        %v524 = vshrl.u32 %v501, 16
        %v526 = vrot.slane %v524, 7
        %v527 = vshll.u32 %v501, 16
        %v529 = vor.u32 %v526, %v527
        %v530 = vrot.slane %v526, 4
        %v532 = vshrl.u32 %v502, 16
        %v534 = vrot.slane %v532, 7
        %v535 = vshll.u32 %v502, 16
        %v537 = vor.u32 %v534, %v535
        %v538 = vrot.slane %v534, 4
        %v540 = vshrl.u32 %v503, 16
        %v542 = vrot.slane %v540, 7
        %v543 = vshll.u32 %v503, 16
        %v545 = vor.u32 %v542, %v543
        %v546 = vrot.slane %v542, 4
        %v548 = vshrl.u32 %v504, 16
        %v550 = vrot.slane %v548, 7
        %v551 = vshll.u32 %v504, 16
        %v553 = vor.u32 %v550, %v551
        %v554 = vrot.slane %v550, 4
        %v556 = vshrl.u32 %v505, 16
        %v558 = vrot.slane %v556, 7
        %v559 = vshll.u32 %v505, 16
        %v561 = vor.u32 %v558, %v559
        %v562 = vrot.slane %v558, 4
        %v564 = vshrl.u32 %v506, 16
        %v566 = vrot.slane %v564, 7
        %v567 = vshll.u32 %v506, 16
        %v569 = vor.u32 %v566, %v567
        %v570 = vrot.slane %v566, 4
        %vm587 = vcmask 1043456
        %vm588 = vmand %vm587, %vm461
        %v589 = vld [vmem:[%s433] sm:$0xf]
        %v590 = vsel %vm588, %v513, %v589
        %591 = vst [vmem:[%s433] sm:$0xf] %v590
        %v592 = vld [vmem:[%s433 + $0x4] sm:$0x1]
        %v593 = vsel %vm436, %v514, %v592
        %594 = vst [vmem:[%s433 + $0x4] sm:$0x1] %v593
        %v595 = vld [vmem:[%s433 + $0x8] sm:$0xf]
        %v596 = vsel %vm588, %v521, %v595
        %597 = vst [vmem:[%s433 + $0x8] sm:$0xf] %v596
        %v598 = vld [vmem:[%s433 + $0xc] sm:$0x1]
        %v599 = vsel %vm436, %v522, %v598
        %600 = vst [vmem:[%s433 + $0xc] sm:$0x1] %v599
        %v601 = vld [vmem:[%s433 + $0x10] sm:$0xf]
        %v602 = vsel %vm588, %v529, %v601
        %603 = vst [vmem:[%s433 + $0x10] sm:$0xf] %v602
        %v604 = vld [vmem:[%s433 + $0x14] sm:$0x1]
        %v605 = vsel %vm436, %v530, %v604
        %606 = vst [vmem:[%s433 + $0x14] sm:$0x1] %v605
        %v607 = vld [vmem:[%s433 + $0x18] sm:$0xf]
        %v608 = vsel %vm588, %v537, %v607
        %609 = vst [vmem:[%s433 + $0x18] sm:$0xf] %v608
        %v610 = vld [vmem:[%s433 + $0x1c] sm:$0x1]
        %v611 = vsel %vm436, %v538, %v610
        %612 = vst [vmem:[%s433 + $0x1c] sm:$0x1] %v611
        %v613 = vld [vmem:[%s433 + $0x20] sm:$0xf]
        %v614 = vsel %vm588, %v545, %v613
        %615 = vst [vmem:[%s433 + $0x20] sm:$0xf] %v614
        %v616 = vld [vmem:[%s433 + $0x24] sm:$0x1]
        %v617 = vsel %vm436, %v546, %v616
        %618 = vst [vmem:[%s433 + $0x24] sm:$0x1] %v617
        %v619 = vld [vmem:[%s433 + $0x28] sm:$0xf]
        %v620 = vsel %vm588, %v553, %v619
        %621 = vst [vmem:[%s433 + $0x28] sm:$0xf] %v620
        %v622 = vld [vmem:[%s433 + $0x2c] sm:$0x1]
        %v623 = vsel %vm436, %v554, %v622
        %624 = vst [vmem:[%s433 + $0x2c] sm:$0x1] %v623
        %v625 = vld [vmem:[%s433 + $0x30] sm:$0xf]
        %v626 = vsel %vm588, %v561, %v625
        %627 = vst [vmem:[%s433 + $0x30] sm:$0xf] %v626
        %v628 = vld [vmem:[%s433 + $0x34] sm:$0x1]
        %v629 = vsel %vm436, %v562, %v628
        %630 = vst [vmem:[%s433 + $0x34] sm:$0x1] %v629
        %v631 = vld [vmem:[%s433 + $0x38] sm:$0xf]
        %v632 = vsel %vm588, %v569, %v631
        %633 = vst [vmem:[%s433 + $0x38] sm:$0xf] %v632
        %v634 = vld [vmem:[%s433 + $0x3c] sm:$0x1]
        %v635 = vsel %vm436, %v570, %v634
        %636 = vst [vmem:[%s433 + $0x3c] sm:$0x1] %v635
        %v637 = vld [vmem:[#allocation2] sm:$0xf]
        %v638 = vld [vmem:[#allocation2 + $0x8] sm:$0xf]
        %v639 = vld [vmem:[#allocation2 + $0x10] sm:$0xf]
        %v640 = vld [vmem:[#allocation2 + $0x18] sm:$0xf]
        %v641 = vld [vmem:[#allocation2 + $0x20] sm:$0xf]
        %v642 = vld [vmem:[#allocation2 + $0x28] sm:$0xf]
        %v643 = vld [vmem:[#allocation2 + $0x30] sm:$0xf]
        %v644 = vld [vmem:[#allocation2 + $0x38] sm:$0xf]
        %645 = vst [vmem:[#allocation3] sm:$0xf] %v637
        %646 = vst [vmem:[#allocation3 + $0xc] sm:$0xf] %v638
        %647 = vst [vmem:[#allocation3 + $0x18] sm:$0xf] %v639
        %648 = vst [vmem:[#allocation3 + $0x24] sm:$0xf] %v640
        %649 = vst [vmem:[#allocation3 + $0x30] sm:$0xf] %v641
        %650 = vst [vmem:[#allocation3 + $0x3c] sm:$0xf] %v642
        %651 = vst [vmem:[#allocation3 + $0x48] sm:$0xf] %v643
        %652 = vst [vmem:[#allocation3 + $0x54] sm:$0xf] %v644
        %v653 = vld [vmem:[#allocation2] sm:$0xf]
        %v654 = vld [vmem:[#allocation2 + $0x4] sm:$0x1]
        %v655 = vld [vmem:[#allocation2 + $0x8] sm:$0xf]
        %v656 = vld [vmem:[#allocation2 + $0xc] sm:$0x1]
        %v657 = vld [vmem:[#allocation2 + $0x10] sm:$0xf]
        %v658 = vld [vmem:[#allocation2 + $0x14] sm:$0x1]
        %v659 = vld [vmem:[#allocation2 + $0x18] sm:$0xf]
        %v660 = vld [vmem:[#allocation2 + $0x1c] sm:$0x1]
        %v661 = vld [vmem:[#allocation2 + $0x20] sm:$0xf]
        %v662 = vld [vmem:[#allocation2 + $0x24] sm:$0x1]
        %v663 = vld [vmem:[#allocation2 + $0x28] sm:$0xf]
        %v664 = vld [vmem:[#allocation2 + $0x2c] sm:$0x1]
        %v665 = vld [vmem:[#allocation2 + $0x30] sm:$0xf]
        %v666 = vld [vmem:[#allocation2 + $0x34] sm:$0x1]
        %v667 = vld [vmem:[#allocation2 + $0x38] sm:$0xf]
        %v668 = vld [vmem:[#allocation2 + $0x3c] sm:$0x1]
        %vm669 = vsmask.f32 3328
        %vm670 = vsmask.f32 7440
        %vm671 = vmor %vm669, %vm670
        %v673 = vshrl.u32 %v653, 16
        %v675 = vrot.slane %v673, 4
        %v676 = vshll.u32 %v653, 16
        %v678 = vrot.slane %v676, 5
        %v679 = vor.u32 %v675, %v678
        %v680 = vrot.slane %v679, 4
        %v682 = vshll.u32 %v654, 16
        %v684 = vrot.slane %v682, 5
        %v685 = vsel %vm671, %v680, %v684
        %v687 = vshrl.u32 %v655, 16
        %v689 = vrot.slane %v687, 4
        %v690 = vshll.u32 %v655, 16
        %v692 = vrot.slane %v690, 5
        %v693 = vor.u32 %v689, %v692
        %v694 = vrot.slane %v693, 4
        %v696 = vshll.u32 %v656, 16
        %v698 = vrot.slane %v696, 5
        %v699 = vsel %vm671, %v694, %v698
        %v701 = vshrl.u32 %v657, 16
        %v703 = vrot.slane %v701, 4
        %v704 = vshll.u32 %v657, 16
        %v706 = vrot.slane %v704, 5
        %v707 = vor.u32 %v703, %v706
        %v708 = vrot.slane %v707, 4
        %v710 = vshll.u32 %v658, 16
        %v712 = vrot.slane %v710, 5
        %v713 = vsel %vm671, %v708, %v712
        %v715 = vshrl.u32 %v659, 16
        %v717 = vrot.slane %v715, 4
        %v718 = vshll.u32 %v659, 16
        %v720 = vrot.slane %v718, 5
        %v721 = vor.u32 %v717, %v720
        %v722 = vrot.slane %v721, 4
        %v724 = vshll.u32 %v660, 16
        %v726 = vrot.slane %v724, 5
        %v727 = vsel %vm671, %v722, %v726
        %v729 = vshrl.u32 %v661, 16
        %v731 = vrot.slane %v729, 4
        %v732 = vshll.u32 %v661, 16
        %v734 = vrot.slane %v732, 5
        %v735 = vor.u32 %v731, %v734
        %v736 = vrot.slane %v735, 4
        %v738 = vshll.u32 %v662, 16
        %v740 = vrot.slane %v738, 5
        %v741 = vsel %vm671, %v736, %v740
        %v743 = vshrl.u32 %v663, 16
        %v745 = vrot.slane %v743, 4
        %v746 = vshll.u32 %v663, 16
        %v748 = vrot.slane %v746, 5
        %v749 = vor.u32 %v745, %v748
        %v750 = vrot.slane %v749, 4
        %v752 = vshll.u32 %v664, 16
        %v754 = vrot.slane %v752, 5
        %v755 = vsel %vm671, %v750, %v754
        %v757 = vshrl.u32 %v665, 16
        %v759 = vrot.slane %v757, 4
        %v760 = vshll.u32 %v665, 16
        %v762 = vrot.slane %v760, 5
        %v763 = vor.u32 %v759, %v762
        %v764 = vrot.slane %v763, 4
        %v766 = vshll.u32 %v666, 16
        %v768 = vrot.slane %v766, 5
        %v769 = vsel %vm671, %v764, %v768
        %v771 = vshrl.u32 %v667, 16
        %v773 = vrot.slane %v771, 4
        %v774 = vshll.u32 %v667, 16
        %v776 = vrot.slane %v774, 5
        %v777 = vor.u32 %v773, %v776
        %v778 = vrot.slane %v777, 4
        %v780 = vshll.u32 %v668, 16
        %v782 = vrot.slane %v780, 5
        %v783 = vsel %vm671, %v778, %v782
        %792 = vst [vmem:[#allocation3 + $0x4] sm:$0xf] %v685
        %793 = vst [vmem:[#allocation3 + $0x10] sm:$0xf] %v699
        %794 = vst [vmem:[#allocation3 + $0x1c] sm:$0xf] %v713
        %795 = vst [vmem:[#allocation3 + $0x28] sm:$0xf] %v727
        %796 = vst [vmem:[#allocation3 + $0x34] sm:$0xf] %v741
        %797 = vst [vmem:[#allocation3 + $0x40] sm:$0xf] %v755
        %798 = vst [vmem:[#allocation3 + $0x4c] sm:$0xf] %v769
        %799 = vst [vmem:[#allocation3 + $0x58] sm:$0xf] %v783
        %v800 = vld [vmem:[#allocation2] sm:$0xe]
        %v801 = vld [vmem:[#allocation2 + $0x4] sm:$0x1]
        %v802 = vld [vmem:[#allocation2 + $0x8] sm:$0xe]
        %v803 = vld [vmem:[#allocation2 + $0xc] sm:$0x1]
        %v804 = vld [vmem:[#allocation2 + $0x10] sm:$0xe]
        %v805 = vld [vmem:[#allocation2 + $0x14] sm:$0x1]
        %v806 = vld [vmem:[#allocation2 + $0x18] sm:$0xe]
        %v807 = vld [vmem:[#allocation2 + $0x1c] sm:$0x1]
        %v808 = vld [vmem:[#allocation2 + $0x20] sm:$0xe]
        %v809 = vld [vmem:[#allocation2 + $0x24] sm:$0x1]
        %v810 = vld [vmem:[#allocation2 + $0x28] sm:$0xe]
        %v811 = vld [vmem:[#allocation2 + $0x2c] sm:$0x1]
        %v812 = vld [vmem:[#allocation2 + $0x30] sm:$0xe]
        %v813 = vld [vmem:[#allocation2 + $0x34] sm:$0x1]
        %v814 = vld [vmem:[#allocation2 + $0x38] sm:$0xe]
        %v815 = vld [vmem:[#allocation2 + $0x3c] sm:$0x1]
        %vm832 = vcmask 1042432
        %vm833 = vcmask 1046532
        %vm834 = vmor %vm832, %vm833
        %v835 = vrot.slane %v800, 5
        %v836 = vrot.slane %v835, 4
        %v837 = vrot.slane %v801, 5
        %v838 = vsel %vm834, %v836, %v837
        %v839 = vrot.slane %v802, 5
        %v840 = vrot.slane %v839, 4
        %v841 = vrot.slane %v803, 5
        %v842 = vsel %vm834, %v840, %v841
        %v843 = vrot.slane %v804, 5
        %v844 = vrot.slane %v843, 4
        %v845 = vrot.slane %v805, 5
        %v846 = vsel %vm834, %v844, %v845
        %v847 = vrot.slane %v806, 5
        %v848 = vrot.slane %v847, 4
        %v849 = vrot.slane %v807, 5
        %v850 = vsel %vm834, %v848, %v849
        %v851 = vrot.slane %v808, 5
        %v852 = vrot.slane %v851, 4
        %v853 = vrot.slane %v809, 5
        %v854 = vsel %vm834, %v852, %v853
        %v855 = vrot.slane %v810, 5
        %v856 = vrot.slane %v855, 4
        %v857 = vrot.slane %v811, 5
        %v858 = vsel %vm834, %v856, %v857
        %v859 = vrot.slane %v812, 5
        %v860 = vrot.slane %v859, 4
        %v861 = vrot.slane %v813, 5
        %v862 = vsel %vm834, %v860, %v861
        %v863 = vrot.slane %v814, 5
        %v864 = vrot.slane %v863, 4
        %v865 = vrot.slane %v815, 5
        %v866 = vsel %vm834, %v864, %v865
        %875 = vst [vmem:[#allocation3 + $0x8] sm:$0xf] %v838
        %876 = vst [vmem:[#allocation3 + $0x14] sm:$0xf] %v842
        %877 = vst [vmem:[#allocation3 + $0x20] sm:$0xf] %v846
        %878 = vst [vmem:[#allocation3 + $0x2c] sm:$0xf] %v850
        %879 = vst [vmem:[#allocation3 + $0x38] sm:$0xf] %v854
        %880 = vst [vmem:[#allocation3 + $0x44] sm:$0xf] %v858
        %881 = vst [vmem:[#allocation3 + $0x50] sm:$0xf] %v862
        %882 = vst [vmem:[#allocation3 + $0x5c] sm:$0xf] %v866
        %v883 = vld [vmem:[#allocation3] sm:$0xff]
        %v884 = vld [vmem:[#allocation3 + $0x8] sm:$0xf]
        %v885 = vld [vmem:[#allocation3 + $0xc] sm:$0xff]
        %v886 = vld [vmem:[#allocation3 + $0x14] sm:$0xf]
        %v887 = vld [vmem:[#allocation3 + $0x18] sm:$0xff]
        %v888 = vld [vmem:[#allocation3 + $0x20] sm:$0xf]
        %v889 = vld [vmem:[#allocation3 + $0x24] sm:$0xff]
        %v890 = vld [vmem:[#allocation3 + $0x2c] sm:$0xf]
        %v891 = vld [vmem:[#allocation3 + $0x30] sm:$0xff]
        %v892 = vld [vmem:[#allocation3 + $0x38] sm:$0xf]
        %v893 = vld [vmem:[#allocation3 + $0x3c] sm:$0xff]
        %v894 = vld [vmem:[#allocation3 + $0x44] sm:$0xf]
        %v895 = vld [vmem:[#allocation3 + $0x48] sm:$0xff]
        %v896 = vld [vmem:[#allocation3 + $0x50] sm:$0xf]
        %v897 = vld [vmem:[#allocation3 + $0x54] sm:$0xff]
        %v898 = vld [vmem:[#allocation3 + $0x5c] sm:$0xf]
        %v899 = vld [vmem:[#allocation6] sm:$0xf]
        %v900 = vld [vmem:[#allocation6 + $0x4] sm:$0xf]
        %v901 = vld [vmem:[#allocation6 + $0x8] sm:$0xf]
        %v902 = vld [vmem:[#allocation6 + $0xc] sm:$0xf]
        %v903 = vld [vmem:[#allocation6 + $0x10] sm:$0xf]
        %v904 = vld [vmem:[#allocation6 + $0x14] sm:$0xf]
        %v905 = vld [vmem:[#allocation6 + $0x18] sm:$0xf]
        %v906 = vld [vmem:[#allocation6 + $0x1c] sm:$0xf]
        %v907 = vld [vmem:[#allocation6 + $0x20] sm:$0xf]
        %v908 = vld [vmem:[#allocation6 + $0x24] sm:$0xf]
        %v909 = vld [vmem:[#allocation6 + $0x28] sm:$0xf]
        %v910 = vld [vmem:[#allocation6 + $0x2c] sm:$0xf]
        %v911 = vld [vmem:[#allocation6 + $0x30] sm:$0xf]
        %v912 = vld [vmem:[#allocation6 + $0x34] sm:$0xf]
        %v913 = vld [vmem:[#allocation6 + $0x38] sm:$0xf]
        %v914 = vld [vmem:[#allocation6 + $0x3c] sm:$0xf]
        %v915 = vld [vmem:[#allocation6 + $0x40] sm:$0xf]
        %v916 = vld [vmem:[#allocation6 + $0x44] sm:$0xf]
        %v917 = vld [vmem:[#allocation6 + $0x48] sm:$0xf]
        %v918 = vld [vmem:[#allocation6 + $0x4c] sm:$0xf]
        %v919 = vld [vmem:[#allocation6 + $0x50] sm:$0xf]
        %v920 = vld [vmem:[#allocation6 + $0x54] sm:$0xf]
        %v921 = vld [vmem:[#allocation6 + $0x58] sm:$0xf]
        %v922 = vld [vmem:[#allocation6 + $0x5c] sm:$0xf]
        %v923 = vld [vmem:[#allocation6 + $0x60] sm:$0xf]
        %v924 = vld [vmem:[#allocation6 + $0x64] sm:$0xf]
        %v925 = vld [vmem:[#allocation6 + $0x68] sm:$0xf]
        %v926 = vld [vmem:[#allocation6 + $0x6c] sm:$0xf]
        %v927 = vld [vmem:[#allocation6 + $0x70] sm:$0xf]
        %v928 = vld [vmem:[#allocation6 + $0x74] sm:$0xf]
        %v929 = vld [vmem:[#allocation6 + $0x78] sm:$0xf]
        %v930 = vld [vmem:[#allocation6 + $0x7c] sm:$0xf]
        %v931 = vld [vmem:[#allocation6 + $0x80] sm:$0xf]
        %v932 = vld [vmem:[#allocation6 + $0x84] sm:$0xf]
        %v933 = vld [vmem:[#allocation6 + $0x88] sm:$0xf]
        %v934 = vld [vmem:[#allocation6 + $0x8c] sm:$0xf]
        %v935 = vld [vmem:[#allocation6 + $0x90] sm:$0xf]
        %v936 = vld [vmem:[#allocation6 + $0x94] sm:$0xf]
        %v937 = vld [vmem:[#allocation6 + $0x98] sm:$0xf]
        %v938 = vld [vmem:[#allocation6 + $0x9c] sm:$0xf]
        %v939 = vld [vmem:[#allocation6 + $0xa0] sm:$0xf]
        %v940 = vld [vmem:[#allocation6 + $0xa4] sm:$0xf]
        %v941 = vld [vmem:[#allocation6 + $0xa8] sm:$0xf]
        %v942 = vld [vmem:[#allocation6 + $0xac] sm:$0xf]
        %v943 = vld [vmem:[#allocation6 + $0xb0] sm:$0xf]
        %v944 = vld [vmem:[#allocation6 + $0xb4] sm:$0xf]
        %v945 = vld [vmem:[#allocation6 + $0xb8] sm:$0xf]
        %v946 = vld [vmem:[#allocation6 + $0xbc] sm:$0xf]
        %v963 = vunpack.c.l.b16 %v883
        %v964 = vunpack.c.h.b16 %v883
        %v965 = vunpack.c.l.b16 %v884
        %v966 = vunpack.c.l.b16 %v885
        %v967 = vunpack.c.h.b16 %v885
        %v968 = vunpack.c.l.b16 %v886
        %v969 = vunpack.c.l.b16 %v887
        %v970 = vunpack.c.h.b16 %v887
        %v971 = vunpack.c.l.b16 %v888
        %v972 = vunpack.c.l.b16 %v889
        %v973 = vunpack.c.h.b16 %v889
        %v974 = vunpack.c.l.b16 %v890
        %v975 = vunpack.c.l.b16 %v891
        %v976 = vunpack.c.h.b16 %v891
        %v977 = vunpack.c.l.b16 %v892
        %v978 = vunpack.c.l.b16 %v893
        %v979 = vunpack.c.h.b16 %v893
        %v980 = vunpack.c.l.b16 %v894
        %v981 = vunpack.c.l.b16 %v895
        %v982 = vunpack.c.h.b16 %v895
        %v983 = vunpack.c.l.b16 %v896
        %v984 = vunpack.c.l.b16 %v897
        %v985 = vunpack.c.h.b16 %v897
        %v986 = vunpack.c.l.b16 %v898
        %v987 = vpack.c.b16 %v966, %v963
        %v988 = vpack.c.b16 %v967, %v964
        %v989 = vpack.c.b16 %v968, %v965
        %v990 = vpack.c.b16 %v972, %v969
        %v991 = vpack.c.b16 %v973, %v970
        %v992 = vpack.c.b16 %v974, %v971
        %v993 = vpack.c.b16 %v978, %v975
        %v994 = vpack.c.b16 %v979, %v976
        %v995 = vpack.c.b16 %v980, %v977
        %v996 = vpack.c.b16 %v984, %v981
        %v997 = vpack.c.b16 %v985, %v982
        %v998 = vpack.c.b16 %v986, %v983
        %v1059 = vunpack.c.l.b16 %v899
        %v1060 = vunpack.c.l.b16 %v900
        %v1061 = vunpack.c.l.b16 %v901
        %v1062 = vunpack.c.l.b16 %v902
        %v1063 = vunpack.c.l.b16 %v903
        %v1064 = vunpack.c.l.b16 %v904
        %v1065 = vunpack.c.l.b16 %v905
        %v1066 = vunpack.c.l.b16 %v906
        %v1067 = vunpack.c.l.b16 %v907
        %v1068 = vunpack.c.l.b16 %v908
        %v1069 = vunpack.c.l.b16 %v909
        %v1070 = vunpack.c.l.b16 %v910
        %v1071 = vunpack.c.l.b16 %v911
        %v1072 = vunpack.c.l.b16 %v912
        %v1073 = vunpack.c.l.b16 %v913
        %v1074 = vunpack.c.l.b16 %v914
        %v1075 = vunpack.c.l.b16 %v915
        %v1076 = vunpack.c.l.b16 %v916
        %v1077 = vunpack.c.l.b16 %v917
        %v1078 = vunpack.c.l.b16 %v918
        %v1079 = vunpack.c.l.b16 %v919
        %v1080 = vunpack.c.l.b16 %v920
        %v1081 = vunpack.c.l.b16 %v921
        %v1082 = vunpack.c.l.b16 %v922
        %v1083 = vunpack.c.l.b16 %v923
        %v1084 = vunpack.c.l.b16 %v924
        %v1085 = vunpack.c.l.b16 %v925
        %v1086 = vunpack.c.l.b16 %v926
        %v1087 = vunpack.c.l.b16 %v927
        %v1088 = vunpack.c.l.b16 %v928
        %v1089 = vunpack.c.l.b16 %v929
        %v1090 = vunpack.c.l.b16 %v930
        %v1091 = vunpack.c.l.b16 %v931
        %v1092 = vunpack.c.l.b16 %v932
        %v1093 = vunpack.c.l.b16 %v933
        %v1094 = vunpack.c.l.b16 %v934
        %v1095 = vunpack.c.l.b16 %v935
        %v1096 = vunpack.c.l.b16 %v936
        %v1097 = vunpack.c.l.b16 %v937
        %v1098 = vunpack.c.l.b16 %v938
        %v1099 = vunpack.c.l.b16 %v939
        %v1100 = vunpack.c.l.b16 %v940
        %v1101 = vunpack.c.l.b16 %v941
        %v1102 = vunpack.c.l.b16 %v942
        %v1103 = vunpack.c.l.b16 %v943
        %v1104 = vunpack.c.l.b16 %v944
        %v1105 = vunpack.c.l.b16 %v945
        %v1106 = vunpack.c.l.b16 %v946
        %v1107 = vpack.c.b16 %v1060, %v1059
        %v1108 = vpack.c.b16 %v1062, %v1061
        %v1109 = vpack.c.b16 %v1064, %v1063
        %v1110 = vpack.c.b16 %v1066, %v1065
        %v1111 = vpack.c.b16 %v1068, %v1067
        %v1112 = vpack.c.b16 %v1070, %v1069
        %v1113 = vpack.c.b16 %v1072, %v1071
        %v1114 = vpack.c.b16 %v1074, %v1073
        %v1115 = vpack.c.b16 %v1076, %v1075
        %v1116 = vpack.c.b16 %v1078, %v1077
        %v1117 = vpack.c.b16 %v1080, %v1079
        %v1118 = vpack.c.b16 %v1082, %v1081
        %v1119 = vpack.c.b16 %v1084, %v1083
        %v1120 = vpack.c.b16 %v1086, %v1085
        %v1121 = vpack.c.b16 %v1088, %v1087
        %v1122 = vpack.c.b16 %v1090, %v1089
        %v1123 = vpack.c.b16 %v1092, %v1091
        %v1124 = vpack.c.b16 %v1094, %v1093
        %v1125 = vpack.c.b16 %v1096, %v1095
        %v1126 = vpack.c.b16 %v1098, %v1097
        %v1127 = vpack.c.b16 %v1100, %v1099
        %v1128 = vpack.c.b16 %v1102, %v1101
        %v1129 = vpack.c.b16 %v1104, %v1103
        %v1130 = vpack.c.b16 %v1106, %v1105
        %1155 = vmatprep.subr.bf16.mxu0 0
        %1156 = vmatpush1.bf16.msra.mxu0 %v1114
        %1157 = vmatprep.subr.bf16.mxu0 0
        %1158 = vmatpush1.bf16.msra.mxu0 %v1113
        %1159 = vmatprep.subr.bf16.mxu0 0
        %1160 = vmatpush1.bf16.msra.mxu0 %v1112
        %1161 = vmatprep.subr.bf16.mxu0 0
        %1162 = vmatpush1.bf16.msra.mxu0 %v1111
        %1163 = vmatprep.subr.bf16.mxu0 0
        %1164 = vmatpush1.bf16.msra.mxu0 %v1110
        %1165 = vmatprep.subr.bf16.mxu0 0
        %1166 = vmatpush1.bf16.msra.mxu0 %v1109
        %1167 = vmatprep.subr.bf16.mxu0 0
        %1168 = vmatpush1.bf16.msra.mxu0 %v1108
        %1169 = vmatprep.subr.bf16.mxu0 0
        %1170 = vmatpush1.bf16.msra.mxu0 %v1107
        %1171 = vmatprep.subr.bf16.mxu0 0
        %1172 = vmatpush2.bf16.msra.mxu0 %v1122
        %1173 = vmatprep.subr.bf16.mxu0 0
        %1174 = vmatpush2.bf16.msra.mxu0 %v1121
        %1175 = vmatprep.subr.bf16.mxu0 0
        %1176 = vmatpush2.bf16.msra.mxu0 %v1120
        %1177 = vmatprep.subr.bf16.mxu0 0
        %1178 = vmatpush2.bf16.msra.mxu0 %v1119
        %1179 = vmatprep.subr.bf16.mxu0 0
        %1180 = vmatpush2.bf16.msra.mxu0 %v1118
        %1181 = vmatprep.subr.bf16.mxu0 0
        %1182 = vmatpush2.bf16.msra.mxu0 %v1117
        %1183 = vmatprep.subr.bf16.mxu0 0
        %1184 = vmatpush2.bf16.msra.mxu0 %v1116
        %1185 = vmatprep.subr.bf16.mxu0 0
        %1186 = vmatpush2.bf16.msra.mxu0 %v1115
        %1187 = vmatprep.mubr.bf16.mxu0 %v988
        %1188 = vmatmul.mubr.bf16.gmra.mxu0 %v987
        %v1189 = vpop.f32.mrf.mxu0
        %v1190 = vadd.f32 0.0, %v1189
        %v1191 = vpop.f32.mrf.mxu0
        %v1192 = vpop.f32.mrf.mxu0
        %v1193 = vadd.f32 0.0, %v1192
        %v1194 = vpop.f32.mrf.mxu0
        %1195 = vmatprep.mubr.bf16.mxu0 %v991
        %1196 = vmatmul.mubr.bf16.gmra.mxu0 %v990
        %v1197 = vpop.f32.mrf.mxu0
        %v1198 = vadd.f32 0.0, %v1197
        %v1199 = vpop.f32.mrf.mxu0
        %v1200 = vpop.f32.mrf.mxu0
        %v1201 = vadd.f32 0.0, %v1200
        %v1202 = vpop.f32.mrf.mxu0
        %1203 = vmatprep.mubr.bf16.mxu0 %v994
        %1204 = vmatmul.mubr.bf16.gmra.mxu0 %v993
        %v1205 = vpop.f32.mrf.mxu0
        %v1206 = vadd.f32 0.0, %v1205
        %v1207 = vpop.f32.mrf.mxu0
        %v1208 = vpop.f32.mrf.mxu0
        %v1209 = vadd.f32 0.0, %v1208
        %v1210 = vpop.f32.mrf.mxu0
        %1211 = vmatprep.mubr.bf16.mxu0 %v997
        %1212 = vmatmul.mubr.bf16.gmra.mxu0 %v996
        %v1213 = vpop.f32.mrf.mxu0
        %v1214 = vadd.f32 0.0, %v1213
        %v1215 = vpop.f32.mrf.mxu0
        %v1216 = vpop.f32.mrf.mxu0
        %v1217 = vadd.f32 0.0, %v1216
        %v1218 = vpop.f32.mrf.mxu0
        %1219 = vdwg.mxu0
        %1220 = vmatprep.subr.bf16.mxu0 0
        %1221 = vmatpush1.bf16.msra.mxu0 %v1130
        %1222 = vmatprep.subr.bf16.mxu0 0
        %1223 = vmatpush1.bf16.msra.mxu0 %v1129
        %1224 = vmatprep.subr.bf16.mxu0 0
        %1225 = vmatpush1.bf16.msra.mxu0 %v1128
        %1226 = vmatprep.subr.bf16.mxu0 0
        %1227 = vmatpush1.bf16.msra.mxu0 %v1127
        %1228 = vmatprep.subr.bf16.mxu0 0
        %1229 = vmatpush1.bf16.msra.mxu0 %v1126
        %1230 = vmatprep.subr.bf16.mxu0 0
        %1231 = vmatpush1.bf16.msra.mxu0 %v1125
        %1232 = vmatprep.subr.bf16.mxu0 0
        %1233 = vmatpush1.bf16.msra.mxu0 %v1124
        %1234 = vmatprep.subr.bf16.mxu0 0
        %1235 = vmatpush1.bf16.msra.mxu0 %v1123
        %1236 = vmatprep.subr.bf16.mxu0 0
        %1237 = vmatpush2.bf16.msra.mxu0 0
        %1238 = vmatprep.subr.bf16.mxu0 0
        %1239 = vmatpush2.bf16.msra.mxu0 0
        %1240 = vmatprep.subr.bf16.mxu0 0
        %1241 = vmatpush2.bf16.msra.mxu0 0
        %1242 = vmatprep.subr.bf16.mxu0 0
        %1243 = vmatpush2.bf16.msra.mxu0 0
        %1244 = vmatprep.subr.bf16.mxu0 0
        %1245 = vmatpush2.bf16.msra.mxu0 0
        %1246 = vmatprep.subr.bf16.mxu0 0
        %1247 = vmatpush2.bf16.msra.mxu0 0
        %1248 = vmatprep.subr.bf16.mxu0 0
        %1249 = vmatpush2.bf16.msra.mxu0 0
        %1250 = vmatprep.subr.bf16.mxu0 0
        %1251 = vmatpush2.bf16.msra.mxu0 0
        %1252 = vmatprep.mubr.bf16.mxu0 0
        %1253 = vmatmul.mubr.bf16.gmra.mxu0 %v989
        %v1254 = vpop.f32.mrf.mxu0
        %v1255 = vadd.f32 %v1190, %v1254
        %v1256 = vpop.f32.mrf.mxu0
        %v1257 = vpop.f32.mrf.mxu0
        %v1258 = vadd.f32 %v1193, %v1257
        %v1259 = vpop.f32.mrf.mxu0
        %1260 = vmatprep.mubr.bf16.mxu0 0
        %1261 = vmatmul.mubr.bf16.gmra.mxu0 %v992
        %v1262 = vpop.f32.mrf.mxu0
        %v1263 = vadd.f32 %v1198, %v1262
        %v1264 = vpop.f32.mrf.mxu0
        %v1265 = vpop.f32.mrf.mxu0
        %v1266 = vadd.f32 %v1201, %v1265
        %v1267 = vpop.f32.mrf.mxu0
        %1268 = vmatprep.mubr.bf16.mxu0 0
        %1269 = vmatmul.mubr.bf16.gmra.mxu0 %v995
        %v1270 = vpop.f32.mrf.mxu0
        %v1271 = vadd.f32 %v1206, %v1270
        %v1272 = vpop.f32.mrf.mxu0
        %v1273 = vpop.f32.mrf.mxu0
        %v1274 = vadd.f32 %v1209, %v1273
        %v1275 = vpop.f32.mrf.mxu0
        %1276 = vmatprep.mubr.bf16.mxu0 0
        %1277 = vmatmul.mubr.bf16.gmra.mxu0 %v998
        %v1278 = vpop.f32.mrf.mxu0
        %v1279 = vadd.f32 %v1214, %v1278
        %v1280 = vpop.f32.mrf.mxu0
        %v1281 = vpop.f32.mrf.mxu0
        %v1282 = vadd.f32 %v1217, %v1281
        %v1283 = vpop.f32.mrf.mxu0
        %1284 = vdwg.mxu0
        %1285 = vst [vmem:[#allocation5] sm:$0xff] %v1255
        %1286 = vst [vmem:[#allocation5 + $0x8] sm:$0xff] %v1258
        %1287 = vst [vmem:[#allocation5 + $0x10] sm:$0xff] %v1263
        %1288 = vst [vmem:[#allocation5 + $0x18] sm:$0xff] %v1266
        %1289 = vst [vmem:[#allocation5 + $0x20] sm:$0xff] %v1271
        %1290 = vst [vmem:[#allocation5 + $0x28] sm:$0xff] %v1274
        %1291 = vst [vmem:[#allocation5 + $0x30] sm:$0xff] %v1279
        %1292 = vst [vmem:[#allocation5 + $0x38] sm:$0xff] %v1282
        %v1293 = vld [vmem:[%s433] sm:$0xf]
        %v1294 = vld [vmem:[%s433 + $0x8] sm:$0xf]
        %v1295 = vld [vmem:[%s433 + $0x10] sm:$0xf]
        %v1296 = vld [vmem:[%s433 + $0x18] sm:$0xf]
        %v1297 = vld [vmem:[%s433 + $0x20] sm:$0xf]
        %v1298 = vld [vmem:[%s433 + $0x28] sm:$0xf]
        %v1299 = vld [vmem:[%s433 + $0x30] sm:$0xf]
        %v1300 = vld [vmem:[%s433 + $0x38] sm:$0xf]
        %1301 = vst [vmem:[#allocation4] sm:$0xf] %v1293
        %1302 = vst [vmem:[#allocation4 + $0xc] sm:$0xf] %v1294
        %1303 = vst [vmem:[#allocation4 + $0x18] sm:$0xf] %v1295
        %1304 = vst [vmem:[#allocation4 + $0x24] sm:$0xf] %v1296
        %1305 = vst [vmem:[#allocation4 + $0x30] sm:$0xf] %v1297
        %1306 = vst [vmem:[#allocation4 + $0x3c] sm:$0xf] %v1298
        %1307 = vst [vmem:[#allocation4 + $0x48] sm:$0xf] %v1299
        %1308 = vst [vmem:[#allocation4 + $0x54] sm:$0xf] %v1300
        %v1309 = vld [vmem:[%s433] sm:$0xf]
        %v1310 = vld [vmem:[%s433 + $0x4] sm:$0x1]
        %v1311 = vld [vmem:[%s433 + $0x8] sm:$0xf]
        %v1312 = vld [vmem:[%s433 + $0xc] sm:$0x1]
        %v1313 = vld [vmem:[%s433 + $0x10] sm:$0xf]
        %v1314 = vld [vmem:[%s433 + $0x14] sm:$0x1]
        %v1315 = vld [vmem:[%s433 + $0x18] sm:$0xf]
        %v1316 = vld [vmem:[%s433 + $0x1c] sm:$0x1]
        %v1317 = vld [vmem:[%s433 + $0x20] sm:$0xf]
        %v1318 = vld [vmem:[%s433 + $0x24] sm:$0x1]
        %v1319 = vld [vmem:[%s433 + $0x28] sm:$0xf]
        %v1320 = vld [vmem:[%s433 + $0x2c] sm:$0x1]
        %v1321 = vld [vmem:[%s433 + $0x30] sm:$0xf]
        %v1322 = vld [vmem:[%s433 + $0x34] sm:$0x1]
        %v1323 = vld [vmem:[%s433 + $0x38] sm:$0xf]
        %v1324 = vld [vmem:[%s433 + $0x3c] sm:$0x1]
        %v1326 = vshrl.u32 %v1309, 16
        %v1328 = vrot.slane %v1326, 4
        %v1329 = vshll.u32 %v1309, 16
        %v1331 = vrot.slane %v1329, 5
        %v1332 = vor.u32 %v1328, %v1331
        %v1333 = vrot.slane %v1332, 4
        %v1335 = vshll.u32 %v1310, 16
        %v1337 = vrot.slane %v1335, 5
        %v1338 = vsel %vm671, %v1333, %v1337
        %v1340 = vshrl.u32 %v1311, 16
        %v1342 = vrot.slane %v1340, 4
        %v1343 = vshll.u32 %v1311, 16
        %v1345 = vrot.slane %v1343, 5
        %v1346 = vor.u32 %v1342, %v1345
        %v1347 = vrot.slane %v1346, 4
        %v1349 = vshll.u32 %v1312, 16
        %v1351 = vrot.slane %v1349, 5
        %v1352 = vsel %vm671, %v1347, %v1351
        %v1354 = vshrl.u32 %v1313, 16
        %v1356 = vrot.slane %v1354, 4
        %v1357 = vshll.u32 %v1313, 16
        %v1359 = vrot.slane %v1357, 5
        %v1360 = vor.u32 %v1356, %v1359
        %v1361 = vrot.slane %v1360, 4
        %v1363 = vshll.u32 %v1314, 16
        %v1365 = vrot.slane %v1363, 5
        %v1366 = vsel %vm671, %v1361, %v1365
        %v1368 = vshrl.u32 %v1315, 16
        %v1370 = vrot.slane %v1368, 4
        %v1371 = vshll.u32 %v1315, 16
        %v1373 = vrot.slane %v1371, 5
        %v1374 = vor.u32 %v1370, %v1373
        %v1375 = vrot.slane %v1374, 4
        %v1377 = vshll.u32 %v1316, 16
        %v1379 = vrot.slane %v1377, 5
        %v1380 = vsel %vm671, %v1375, %v1379
        %v1382 = vshrl.u32 %v1317, 16
        %v1384 = vrot.slane %v1382, 4
        %v1385 = vshll.u32 %v1317, 16
        %v1387 = vrot.slane %v1385, 5
        %v1388 = vor.u32 %v1384, %v1387
        %v1389 = vrot.slane %v1388, 4
        %v1391 = vshll.u32 %v1318, 16
        %v1393 = vrot.slane %v1391, 5
        %v1394 = vsel %vm671, %v1389, %v1393
        %v1396 = vshrl.u32 %v1319, 16
        %v1398 = vrot.slane %v1396, 4
        %v1399 = vshll.u32 %v1319, 16
        %v1401 = vrot.slane %v1399, 5
        %v1402 = vor.u32 %v1398, %v1401
        %v1403 = vrot.slane %v1402, 4
        %v1405 = vshll.u32 %v1320, 16
        %v1407 = vrot.slane %v1405, 5
        %v1408 = vsel %vm671, %v1403, %v1407
        %v1410 = vshrl.u32 %v1321, 16
        %v1412 = vrot.slane %v1410, 4
        %v1413 = vshll.u32 %v1321, 16
        %v1415 = vrot.slane %v1413, 5
        %v1416 = vor.u32 %v1412, %v1415
        %v1417 = vrot.slane %v1416, 4
        %v1419 = vshll.u32 %v1322, 16
        %v1421 = vrot.slane %v1419, 5
        %v1422 = vsel %vm671, %v1417, %v1421
        %v1424 = vshrl.u32 %v1323, 16
        %v1426 = vrot.slane %v1424, 4
        %v1427 = vshll.u32 %v1323, 16
        %v1429 = vrot.slane %v1427, 5
        %v1430 = vor.u32 %v1426, %v1429
        %v1431 = vrot.slane %v1430, 4
        %v1433 = vshll.u32 %v1324, 16
        %v1435 = vrot.slane %v1433, 5
        %v1436 = vsel %vm671, %v1431, %v1435
        %1445 = vst [vmem:[#allocation4 + $0x4] sm:$0xf] %v1338
        %1446 = vst [vmem:[#allocation4 + $0x10] sm:$0xf] %v1352
        %1447 = vst [vmem:[#allocation4 + $0x1c] sm:$0xf] %v1366
        %1448 = vst [vmem:[#allocation4 + $0x28] sm:$0xf] %v1380
        %1449 = vst [vmem:[#allocation4 + $0x34] sm:$0xf] %v1394
        %1450 = vst [vmem:[#allocation4 + $0x40] sm:$0xf] %v1408
        %1451 = vst [vmem:[#allocation4 + $0x4c] sm:$0xf] %v1422
        %1452 = vst [vmem:[#allocation4 + $0x58] sm:$0xf] %v1436
        %v1453 = vld [vmem:[%s433] sm:$0xe]
        %v1454 = vld [vmem:[%s433 + $0x4] sm:$0x1]
        %v1455 = vld [vmem:[%s433 + $0x8] sm:$0xe]
        %v1456 = vld [vmem:[%s433 + $0xc] sm:$0x1]
        %v1457 = vld [vmem:[%s433 + $0x10] sm:$0xe]
        %v1458 = vld [vmem:[%s433 + $0x14] sm:$0x1]
        %v1459 = vld [vmem:[%s433 + $0x18] sm:$0xe]
        %v1460 = vld [vmem:[%s433 + $0x1c] sm:$0x1]
        %v1461 = vld [vmem:[%s433 + $0x20] sm:$0xe]
        %v1462 = vld [vmem:[%s433 + $0x24] sm:$0x1]
        %v1463 = vld [vmem:[%s433 + $0x28] sm:$0xe]
        %v1464 = vld [vmem:[%s433 + $0x2c] sm:$0x1]
        %v1465 = vld [vmem:[%s433 + $0x30] sm:$0xe]
        %v1466 = vld [vmem:[%s433 + $0x34] sm:$0x1]
        %v1467 = vld [vmem:[%s433 + $0x38] sm:$0xe]
        %v1468 = vld [vmem:[%s433 + $0x3c] sm:$0x1]
        %v1485 = vrot.slane %v1453, 5
        %v1486 = vrot.slane %v1485, 4
        %v1487 = vrot.slane %v1454, 5
        %v1488 = vsel %vm834, %v1486, %v1487
        %v1489 = vrot.slane %v1455, 5
        %v1490 = vrot.slane %v1489, 4
        %v1491 = vrot.slane %v1456, 5
        %v1492 = vsel %vm834, %v1490, %v1491
        %v1493 = vrot.slane %v1457, 5
        %v1494 = vrot.slane %v1493, 4
        %v1495 = vrot.slane %v1458, 5
        %v1496 = vsel %vm834, %v1494, %v1495
        %v1497 = vrot.slane %v1459, 5
        %v1498 = vrot.slane %v1497, 4
        %v1499 = vrot.slane %v1460, 5
        %v1500 = vsel %vm834, %v1498, %v1499
        %v1501 = vrot.slane %v1461, 5
        %v1502 = vrot.slane %v1501, 4
        %v1503 = vrot.slane %v1462, 5
        %v1504 = vsel %vm834, %v1502, %v1503
        %v1505 = vrot.slane %v1463, 5
        %v1506 = vrot.slane %v1505, 4
        %v1507 = vrot.slane %v1464, 5
        %v1508 = vsel %vm834, %v1506, %v1507
        %v1509 = vrot.slane %v1465, 5
        %v1510 = vrot.slane %v1509, 4
        %v1511 = vrot.slane %v1466, 5
        %v1512 = vsel %vm834, %v1510, %v1511
        %v1513 = vrot.slane %v1467, 5
        %v1514 = vrot.slane %v1513, 4
        %v1515 = vrot.slane %v1468, 5
        %v1516 = vsel %vm834, %v1514, %v1515
        %1525 = vst [vmem:[#allocation4 + $0x8] sm:$0xf] %v1488
        %1526 = vst [vmem:[#allocation4 + $0x14] sm:$0xf] %v1492
        %1527 = vst [vmem:[#allocation4 + $0x20] sm:$0xf] %v1496
        %1528 = vst [vmem:[#allocation4 + $0x2c] sm:$0xf] %v1500
        %1529 = vst [vmem:[#allocation4 + $0x38] sm:$0xf] %v1504
        %1530 = vst [vmem:[#allocation4 + $0x44] sm:$0xf] %v1508
        %1531 = vst [vmem:[#allocation4 + $0x50] sm:$0xf] %v1512
        %1532 = vst [vmem:[#allocation4 + $0x5c] sm:$0xf] %v1516
        %v1533 = vld [vmem:[#allocation4] sm:$0xff]
        %v1534 = vld [vmem:[#allocation4 + $0x8] sm:$0xf]
        %v1535 = vld [vmem:[#allocation4 + $0xc] sm:$0xff]
        %v1536 = vld [vmem:[#allocation4 + $0x14] sm:$0xf]
        %v1537 = vld [vmem:[#allocation4 + $0x18] sm:$0xff]
        %v1538 = vld [vmem:[#allocation4 + $0x20] sm:$0xf]
        %v1539 = vld [vmem:[#allocation4 + $0x24] sm:$0xff]
        %v1540 = vld [vmem:[#allocation4 + $0x2c] sm:$0xf]
        %v1541 = vld [vmem:[#allocation4 + $0x30] sm:$0xff]
        %v1542 = vld [vmem:[#allocation4 + $0x38] sm:$0xf]
        %v1543 = vld [vmem:[#allocation4 + $0x3c] sm:$0xff]
        %v1544 = vld [vmem:[#allocation4 + $0x44] sm:$0xf]
        %v1545 = vld [vmem:[#allocation4 + $0x48] sm:$0xff]
        %v1546 = vld [vmem:[#allocation4 + $0x50] sm:$0xf]
        %v1547 = vld [vmem:[#allocation4 + $0x54] sm:$0xff]
        %v1548 = vld [vmem:[#allocation4 + $0x5c] sm:$0xf]
        %v1549 = vld [vmem:[#allocation6 + $0xc0] sm:$0xf]
        %v1550 = vld [vmem:[#allocation6 + $0xc4] sm:$0xf]
        %v1551 = vld [vmem:[#allocation6 + $0xc8] sm:$0xf]
        %v1552 = vld [vmem:[#allocation6 + $0xcc] sm:$0xf]
        %v1553 = vld [vmem:[#allocation6 + $0xd0] sm:$0xf]
        %v1554 = vld [vmem:[#allocation6 + $0xd4] sm:$0xf]
        %v1555 = vld [vmem:[#allocation6 + $0xd8] sm:$0xf]
        %v1556 = vld [vmem:[#allocation6 + $0xdc] sm:$0xf]
        %v1557 = vld [vmem:[#allocation6 + $0xe0] sm:$0xf]
        %v1558 = vld [vmem:[#allocation6 + $0xe4] sm:$0xf]
        %v1559 = vld [vmem:[#allocation6 + $0xe8] sm:$0xf]
        %v1560 = vld [vmem:[#allocation6 + $0xec] sm:$0xf]
        %v1561 = vld [vmem:[#allocation6 + $0xf0] sm:$0xf]
        %v1562 = vld [vmem:[#allocation6 + $0xf4] sm:$0xf]
        %v1563 = vld [vmem:[#allocation6 + $0xf8] sm:$0xf]
        %v1564 = vld [vmem:[#allocation6 + $0xfc] sm:$0xf]
        %v1565 = vld [vmem:[#allocation6 + $0x100] sm:$0xf]
        %v1566 = vld [vmem:[#allocation6 + $0x104] sm:$0xf]
        %v1567 = vld [vmem:[#allocation6 + $0x108] sm:$0xf]
        %v1568 = vld [vmem:[#allocation6 + $0x10c] sm:$0xf]
        %v1569 = vld [vmem:[#allocation6 + $0x110] sm:$0xf]
        %v1570 = vld [vmem:[#allocation6 + $0x114] sm:$0xf]
        %v1571 = vld [vmem:[#allocation6 + $0x118] sm:$0xf]
        %v1572 = vld [vmem:[#allocation6 + $0x11c] sm:$0xf]
        %v1573 = vld [vmem:[#allocation6 + $0x120] sm:$0xf]
        %v1574 = vld [vmem:[#allocation6 + $0x124] sm:$0xf]
        %v1575 = vld [vmem:[#allocation6 + $0x128] sm:$0xf]
        %v1576 = vld [vmem:[#allocation6 + $0x12c] sm:$0xf]
        %v1577 = vld [vmem:[#allocation6 + $0x130] sm:$0xf]
        %v1578 = vld [vmem:[#allocation6 + $0x134] sm:$0xf]
        %v1579 = vld [vmem:[#allocation6 + $0x138] sm:$0xf]
        %v1580 = vld [vmem:[#allocation6 + $0x13c] sm:$0xf]
        %v1581 = vld [vmem:[#allocation6 + $0x140] sm:$0xf]
        %v1582 = vld [vmem:[#allocation6 + $0x144] sm:$0xf]
        %v1583 = vld [vmem:[#allocation6 + $0x148] sm:$0xf]
        %v1584 = vld [vmem:[#allocation6 + $0x14c] sm:$0xf]
        %v1585 = vld [vmem:[#allocation6 + $0x150] sm:$0xf]
        %v1586 = vld [vmem:[#allocation6 + $0x154] sm:$0xf]
        %v1587 = vld [vmem:[#allocation6 + $0x158] sm:$0xf]
        %v1588 = vld [vmem:[#allocation6 + $0x15c] sm:$0xf]
        %v1589 = vld [vmem:[#allocation6 + $0x160] sm:$0xf]
        %v1590 = vld [vmem:[#allocation6 + $0x164] sm:$0xf]
        %v1591 = vld [vmem:[#allocation6 + $0x168] sm:$0xf]
        %v1592 = vld [vmem:[#allocation6 + $0x16c] sm:$0xf]
        %v1593 = vld [vmem:[#allocation6 + $0x170] sm:$0xf]
        %v1594 = vld [vmem:[#allocation6 + $0x174] sm:$0xf]
        %v1595 = vld [vmem:[#allocation6 + $0x178] sm:$0xf]
        %v1596 = vld [vmem:[#allocation6 + $0x17c] sm:$0xf]
        %v1613 = vunpack.c.l.b16 %v1533
        %v1614 = vunpack.c.h.b16 %v1533
        %v1615 = vunpack.c.l.b16 %v1534
        %v1616 = vunpack.c.l.b16 %v1535
        %v1617 = vunpack.c.h.b16 %v1535
        %v1618 = vunpack.c.l.b16 %v1536
        %v1619 = vunpack.c.l.b16 %v1537
        %v1620 = vunpack.c.h.b16 %v1537
        %v1621 = vunpack.c.l.b16 %v1538
        %v1622 = vunpack.c.l.b16 %v1539
        %v1623 = vunpack.c.h.b16 %v1539
        %v1624 = vunpack.c.l.b16 %v1540
        %v1625 = vunpack.c.l.b16 %v1541
        %v1626 = vunpack.c.h.b16 %v1541
        %v1627 = vunpack.c.l.b16 %v1542
        %v1628 = vunpack.c.l.b16 %v1543
        %v1629 = vunpack.c.h.b16 %v1543
        %v1630 = vunpack.c.l.b16 %v1544
        %v1631 = vunpack.c.l.b16 %v1545
        %v1632 = vunpack.c.h.b16 %v1545
        %v1633 = vunpack.c.l.b16 %v1546
        %v1634 = vunpack.c.l.b16 %v1547
        %v1635 = vunpack.c.h.b16 %v1547
        %v1636 = vunpack.c.l.b16 %v1548
        %v1637 = vpack.c.b16 %v1616, %v1613
        %v1638 = vpack.c.b16 %v1617, %v1614
        %v1639 = vpack.c.b16 %v1618, %v1615
        %v1640 = vpack.c.b16 %v1622, %v1619
        %v1641 = vpack.c.b16 %v1623, %v1620
        %v1642 = vpack.c.b16 %v1624, %v1621
        %v1643 = vpack.c.b16 %v1628, %v1625
        %v1644 = vpack.c.b16 %v1629, %v1626
        %v1645 = vpack.c.b16 %v1630, %v1627
        %v1646 = vpack.c.b16 %v1634, %v1631
        %v1647 = vpack.c.b16 %v1635, %v1632
        %v1648 = vpack.c.b16 %v1636, %v1633
        %v1709 = vunpack.c.l.b16 %v1549
        %v1710 = vunpack.c.l.b16 %v1550
        %v1711 = vunpack.c.l.b16 %v1551
        %v1712 = vunpack.c.l.b16 %v1552
        %v1713 = vunpack.c.l.b16 %v1553
        %v1714 = vunpack.c.l.b16 %v1554
        %v1715 = vunpack.c.l.b16 %v1555
        %v1716 = vunpack.c.l.b16 %v1556
        %v1717 = vunpack.c.l.b16 %v1557
        %v1718 = vunpack.c.l.b16 %v1558
        %v1719 = vunpack.c.l.b16 %v1559
        %v1720 = vunpack.c.l.b16 %v1560
        %v1721 = vunpack.c.l.b16 %v1561
        %v1722 = vunpack.c.l.b16 %v1562
        %v1723 = vunpack.c.l.b16 %v1563
        %v1724 = vunpack.c.l.b16 %v1564
        %v1725 = vunpack.c.l.b16 %v1565
        %v1726 = vunpack.c.l.b16 %v1566
        %v1727 = vunpack.c.l.b16 %v1567
        %v1728 = vunpack.c.l.b16 %v1568
        %v1729 = vunpack.c.l.b16 %v1569
        %v1730 = vunpack.c.l.b16 %v1570
        %v1731 = vunpack.c.l.b16 %v1571
        %v1732 = vunpack.c.l.b16 %v1572
        %v1733 = vunpack.c.l.b16 %v1573
        %v1734 = vunpack.c.l.b16 %v1574
        %v1735 = vunpack.c.l.b16 %v1575
        %v1736 = vunpack.c.l.b16 %v1576
        %v1737 = vunpack.c.l.b16 %v1577
        %v1738 = vunpack.c.l.b16 %v1578
        %v1739 = vunpack.c.l.b16 %v1579
        %v1740 = vunpack.c.l.b16 %v1580
        %v1741 = vunpack.c.l.b16 %v1581
        %v1742 = vunpack.c.l.b16 %v1582
        %v1743 = vunpack.c.l.b16 %v1583
        %v1744 = vunpack.c.l.b16 %v1584
        %v1745 = vunpack.c.l.b16 %v1585
        %v1746 = vunpack.c.l.b16 %v1586
        %v1747 = vunpack.c.l.b16 %v1587
        %v1748 = vunpack.c.l.b16 %v1588
        %v1749 = vunpack.c.l.b16 %v1589
        %v1750 = vunpack.c.l.b16 %v1590
        %v1751 = vunpack.c.l.b16 %v1591
        %v1752 = vunpack.c.l.b16 %v1592
        %v1753 = vunpack.c.l.b16 %v1593
        %v1754 = vunpack.c.l.b16 %v1594
        %v1755 = vunpack.c.l.b16 %v1595
        %v1756 = vunpack.c.l.b16 %v1596
        %v1757 = vpack.c.b16 %v1710, %v1709
        %v1758 = vpack.c.b16 %v1712, %v1711
        %v1759 = vpack.c.b16 %v1714, %v1713
        %v1760 = vpack.c.b16 %v1716, %v1715
        %v1761 = vpack.c.b16 %v1718, %v1717
        %v1762 = vpack.c.b16 %v1720, %v1719
        %v1763 = vpack.c.b16 %v1722, %v1721
        %v1764 = vpack.c.b16 %v1724, %v1723
        %v1765 = vpack.c.b16 %v1726, %v1725
        %v1766 = vpack.c.b16 %v1728, %v1727
        %v1767 = vpack.c.b16 %v1730, %v1729
        %v1768 = vpack.c.b16 %v1732, %v1731
        %v1769 = vpack.c.b16 %v1734, %v1733
        %v1770 = vpack.c.b16 %v1736, %v1735
        %v1771 = vpack.c.b16 %v1738, %v1737
        %v1772 = vpack.c.b16 %v1740, %v1739
        %v1773 = vpack.c.b16 %v1742, %v1741
        %v1774 = vpack.c.b16 %v1744, %v1743
        %v1775 = vpack.c.b16 %v1746, %v1745
        %v1776 = vpack.c.b16 %v1748, %v1747
        %v1777 = vpack.c.b16 %v1750, %v1749
        %v1778 = vpack.c.b16 %v1752, %v1751
        %v1779 = vpack.c.b16 %v1754, %v1753
        %v1780 = vpack.c.b16 %v1756, %v1755
        %1805 = vmatprep.subr.bf16.mxu0 0
        %1806 = vmatpush1.bf16.msra.mxu0 %v1764
        %1807 = vmatprep.subr.bf16.mxu0 0
        %1808 = vmatpush1.bf16.msra.mxu0 %v1763
        %1809 = vmatprep.subr.bf16.mxu0 0
        %1810 = vmatpush1.bf16.msra.mxu0 %v1762
        %1811 = vmatprep.subr.bf16.mxu0 0
        %1812 = vmatpush1.bf16.msra.mxu0 %v1761
        %1813 = vmatprep.subr.bf16.mxu0 0
        %1814 = vmatpush1.bf16.msra.mxu0 %v1760
        %1815 = vmatprep.subr.bf16.mxu0 0
        %1816 = vmatpush1.bf16.msra.mxu0 %v1759
        %1817 = vmatprep.subr.bf16.mxu0 0
        %1818 = vmatpush1.bf16.msra.mxu0 %v1758
        %1819 = vmatprep.subr.bf16.mxu0 0
        %1820 = vmatpush1.bf16.msra.mxu0 %v1757
        %1821 = vmatprep.subr.bf16.mxu0 0
        %1822 = vmatpush2.bf16.msra.mxu0 %v1772
        %1823 = vmatprep.subr.bf16.mxu0 0
        %1824 = vmatpush2.bf16.msra.mxu0 %v1771
        %1825 = vmatprep.subr.bf16.mxu0 0
        %1826 = vmatpush2.bf16.msra.mxu0 %v1770
        %1827 = vmatprep.subr.bf16.mxu0 0
        %1828 = vmatpush2.bf16.msra.mxu0 %v1769
        %1829 = vmatprep.subr.bf16.mxu0 0
        %1830 = vmatpush2.bf16.msra.mxu0 %v1768
        %1831 = vmatprep.subr.bf16.mxu0 0
        %1832 = vmatpush2.bf16.msra.mxu0 %v1767
        %1833 = vmatprep.subr.bf16.mxu0 0
        %1834 = vmatpush2.bf16.msra.mxu0 %v1766
        %1835 = vmatprep.subr.bf16.mxu0 0
        %1836 = vmatpush2.bf16.msra.mxu0 %v1765
        %1837 = vmatprep.mubr.bf16.mxu0 %v1638
        %1838 = vmatmul.mubr.bf16.gmra.mxu0 %v1637
        %v1839 = vpop.f32.mrf.mxu0
        %v1840 = vadd.f32 0.0, %v1839
        %v1841 = vpop.f32.mrf.mxu0
        %v1842 = vpop.f32.mrf.mxu0
        %v1843 = vadd.f32 0.0, %v1842
        %v1844 = vpop.f32.mrf.mxu0
        %1845 = vmatprep.mubr.bf16.mxu0 %v1641
        %1846 = vmatmul.mubr.bf16.gmra.mxu0 %v1640
        %v1847 = vpop.f32.mrf.mxu0
        %v1848 = vadd.f32 0.0, %v1847
        %v1849 = vpop.f32.mrf.mxu0
        %v1850 = vpop.f32.mrf.mxu0
        %v1851 = vadd.f32 0.0, %v1850
        %v1852 = vpop.f32.mrf.mxu0
        %1853 = vmatprep.mubr.bf16.mxu0 %v1644
        %1854 = vmatmul.mubr.bf16.gmra.mxu0 %v1643
        %v1855 = vpop.f32.mrf.mxu0
        %v1856 = vadd.f32 0.0, %v1855
        %v1857 = vpop.f32.mrf.mxu0
        %v1858 = vpop.f32.mrf.mxu0
        %v1859 = vadd.f32 0.0, %v1858
        %v1860 = vpop.f32.mrf.mxu0
        %1861 = vmatprep.mubr.bf16.mxu0 %v1647
        %1862 = vmatmul.mubr.bf16.gmra.mxu0 %v1646
        %v1863 = vpop.f32.mrf.mxu0
        %v1864 = vadd.f32 0.0, %v1863
        %v1865 = vpop.f32.mrf.mxu0
        %v1866 = vpop.f32.mrf.mxu0
        %v1867 = vadd.f32 0.0, %v1866
        %v1868 = vpop.f32.mrf.mxu0
        %1869 = vdwg.mxu0
        %1870 = vmatprep.subr.bf16.mxu0 0
        %1871 = vmatpush1.bf16.msra.mxu0 %v1780
        %1872 = vmatprep.subr.bf16.mxu0 0
        %1873 = vmatpush1.bf16.msra.mxu0 %v1779
        %1874 = vmatprep.subr.bf16.mxu0 0
        %1875 = vmatpush1.bf16.msra.mxu0 %v1778
        %1876 = vmatprep.subr.bf16.mxu0 0
        %1877 = vmatpush1.bf16.msra.mxu0 %v1777
        %1878 = vmatprep.subr.bf16.mxu0 0
        %1879 = vmatpush1.bf16.msra.mxu0 %v1776
        %1880 = vmatprep.subr.bf16.mxu0 0
        %1881 = vmatpush1.bf16.msra.mxu0 %v1775
        %1882 = vmatprep.subr.bf16.mxu0 0
        %1883 = vmatpush1.bf16.msra.mxu0 %v1774
        %1884 = vmatprep.subr.bf16.mxu0 0
        %1885 = vmatpush1.bf16.msra.mxu0 %v1773
        %1886 = vmatprep.subr.bf16.mxu0 0
        %1887 = vmatpush2.bf16.msra.mxu0 0
        %1888 = vmatprep.subr.bf16.mxu0 0
        %1889 = vmatpush2.bf16.msra.mxu0 0
        %1890 = vmatprep.subr.bf16.mxu0 0
        %1891 = vmatpush2.bf16.msra.mxu0 0
        %1892 = vmatprep.subr.bf16.mxu0 0
        %1893 = vmatpush2.bf16.msra.mxu0 0
        %1894 = vmatprep.subr.bf16.mxu0 0
        %1895 = vmatpush2.bf16.msra.mxu0 0
        %1896 = vmatprep.subr.bf16.mxu0 0
        %1897 = vmatpush2.bf16.msra.mxu0 0
        %1898 = vmatprep.subr.bf16.mxu0 0
        %1899 = vmatpush2.bf16.msra.mxu0 0
        %1900 = vmatprep.subr.bf16.mxu0 0
        %1901 = vmatpush2.bf16.msra.mxu0 0
        %1902 = vmatprep.mubr.bf16.mxu0 0
        %1903 = vmatmul.mubr.bf16.gmra.mxu0 %v1639
        %v1904 = vpop.f32.mrf.mxu0
        %v1905 = vadd.f32 %v1840, %v1904
        %v1906 = vpop.f32.mrf.mxu0
        %v1907 = vpop.f32.mrf.mxu0
        %v1908 = vadd.f32 %v1843, %v1907
        %v1909 = vpop.f32.mrf.mxu0
        %1910 = vmatprep.mubr.bf16.mxu0 0
        %1911 = vmatmul.mubr.bf16.gmra.mxu0 %v1642
        %v1912 = vpop.f32.mrf.mxu0
        %v1913 = vadd.f32 %v1848, %v1912
        %v1914 = vpop.f32.mrf.mxu0
        %v1915 = vpop.f32.mrf.mxu0
        %v1916 = vadd.f32 %v1851, %v1915
        %v1917 = vpop.f32.mrf.mxu0
        %1918 = vmatprep.mubr.bf16.mxu0 0
        %1919 = vmatmul.mubr.bf16.gmra.mxu0 %v1645
        %v1920 = vpop.f32.mrf.mxu0
        %v1921 = vadd.f32 %v1856, %v1920
        %v1922 = vpop.f32.mrf.mxu0
        %v1923 = vpop.f32.mrf.mxu0
        %v1924 = vadd.f32 %v1859, %v1923
        %v1925 = vpop.f32.mrf.mxu0
        %1926 = vmatprep.mubr.bf16.mxu0 0
        %1927 = vmatmul.mubr.bf16.gmra.mxu0 %v1648
        %v1928 = vpop.f32.mrf.mxu0
        %v1929 = vadd.f32 %v1864, %v1928
        %v1930 = vpop.f32.mrf.mxu0
        %v1931 = vpop.f32.mrf.mxu0
        %v1932 = vadd.f32 %v1867, %v1931
        %v1933 = vpop.f32.mrf.mxu0
        %1934 = vdwg.mxu0
        %v1935 = vld [vmem:[#allocation5] sm:$0xff]
        %v1936 = vld [vmem:[#allocation5 + $0x8] sm:$0xff]
        %v1937 = vld [vmem:[#allocation5 + $0x10] sm:$0xff]
        %v1938 = vld [vmem:[#allocation5 + $0x18] sm:$0xff]
        %v1939 = vld [vmem:[#allocation5 + $0x20] sm:$0xff]
        %v1940 = vld [vmem:[#allocation5 + $0x28] sm:$0xff]
        %v1941 = vld [vmem:[#allocation5 + $0x30] sm:$0xff]
        %v1942 = vld [vmem:[#allocation5 + $0x38] sm:$0xff]
        %v1943 = vadd.f32 %v1935, %v1905
        %v1944 = vadd.f32 %v1936, %v1908
        %v1945 = vadd.f32 %v1937, %v1913
        %v1946 = vadd.f32 %v1938, %v1916
        %v1947 = vadd.f32 %v1939, %v1921
        %v1948 = vadd.f32 %v1940, %v1924
        %v1949 = vadd.f32 %v1941, %v1929
        %v1950 = vadd.f32 %v1942, %v1932
        %1951 = vst [vmem:[#allocation5] sm:$0xff] %v1943
        %1952 = vst [vmem:[#allocation5 + $0x8] sm:$0xff] %v1944
        %1953 = vst [vmem:[#allocation5 + $0x10] sm:$0xff] %v1945
        %1954 = vst [vmem:[#allocation5 + $0x18] sm:$0xff] %v1946
        %1955 = vst [vmem:[#allocation5 + $0x20] sm:$0xff] %v1947
        %1956 = vst [vmem:[#allocation5 + $0x28] sm:$0xff] %v1948
        %1957 = vst [vmem:[#allocation5 + $0x30] sm:$0xff] %v1949
        %1958 = vst [vmem:[#allocation5 + $0x38] sm:$0xff] %v1950
        %s1959 = scalar_lea.vmem [#allocation2], 16
        %v1960 = vld [vmem:[%s1959] sm:$0xf]
        %v1961 = vld [vmem:[%s1959 + $0x8] sm:$0xf]
        %v1962 = vld [vmem:[%s1959 + $0x10] sm:$0xf]
        %v1963 = vld [vmem:[%s1959 + $0x18] sm:$0xf]
        %v1964 = vld [vmem:[%s1959 + $0x20] sm:$0xf]
        %v1965 = vld [vmem:[%s1959 + $0x28] sm:$0xf]
        %v1966 = vld [vmem:[%s1959 + $0x30] sm:$0xf]
        %v1967 = vld [vmem:[%s1959 + $0x38] sm:$0xf]
        %1968 = vst [vmem:[#allocation3] sm:$0xf] %v1960
        %1969 = vst [vmem:[#allocation3 + $0xc] sm:$0xf] %v1961
        %1970 = vst [vmem:[#allocation3 + $0x18] sm:$0xf] %v1962
        %1971 = vst [vmem:[#allocation3 + $0x24] sm:$0xf] %v1963
        %1972 = vst [vmem:[#allocation3 + $0x30] sm:$0xf] %v1964
        %1973 = vst [vmem:[#allocation3 + $0x3c] sm:$0xf] %v1965
        %1974 = vst [vmem:[#allocation3 + $0x48] sm:$0xf] %v1966
        %1975 = vst [vmem:[#allocation3 + $0x54] sm:$0xf] %v1967
        %v1976 = vld [vmem:[%s1959] sm:$0xf]
        %v1977 = vld [vmem:[%s1959 + $0x4] sm:$0x1]
        %v1978 = vld [vmem:[%s1959 + $0x8] sm:$0xf]
        %v1979 = vld [vmem:[%s1959 + $0xc] sm:$0x1]
        %v1980 = vld [vmem:[%s1959 + $0x10] sm:$0xf]
        %v1981 = vld [vmem:[%s1959 + $0x14] sm:$0x1]
        %v1982 = vld [vmem:[%s1959 + $0x18] sm:$0xf]
        %v1983 = vld [vmem:[%s1959 + $0x1c] sm:$0x1]
        %v1984 = vld [vmem:[%s1959 + $0x20] sm:$0xf]
        %v1985 = vld [vmem:[%s1959 + $0x24] sm:$0x1]
        %v1986 = vld [vmem:[%s1959 + $0x28] sm:$0xf]
        %v1987 = vld [vmem:[%s1959 + $0x2c] sm:$0x1]
        %v1988 = vld [vmem:[%s1959 + $0x30] sm:$0xf]
        %v1989 = vld [vmem:[%s1959 + $0x34] sm:$0x1]
        %v1990 = vld [vmem:[%s1959 + $0x38] sm:$0xf]
        %v1991 = vld [vmem:[%s1959 + $0x3c] sm:$0x1]
        %v1993 = vshrl.u32 %v1976, 16
        %v1995 = vrot.slane %v1993, 4
        %v1996 = vshll.u32 %v1976, 16
        %v1998 = vrot.slane %v1996, 5
        %v1999 = vor.u32 %v1995, %v1998
        %v2000 = vrot.slane %v1999, 4
        %v2002 = vshll.u32 %v1977, 16
        %v2004 = vrot.slane %v2002, 5
        %v2005 = vsel %vm671, %v2000, %v2004
        %v2007 = vshrl.u32 %v1978, 16
        %v2009 = vrot.slane %v2007, 4
        %v2010 = vshll.u32 %v1978, 16
        %v2012 = vrot.slane %v2010, 5
        %v2013 = vor.u32 %v2009, %v2012
        %v2014 = vrot.slane %v2013, 4
        %v2016 = vshll.u32 %v1979, 16
        %v2018 = vrot.slane %v2016, 5
        %v2019 = vsel %vm671, %v2014, %v2018
        %v2021 = vshrl.u32 %v1980, 16
        %v2023 = vrot.slane %v2021, 4
        %v2024 = vshll.u32 %v1980, 16
        %v2026 = vrot.slane %v2024, 5
        %v2027 = vor.u32 %v2023, %v2026
        %v2028 = vrot.slane %v2027, 4
        %v2030 = vshll.u32 %v1981, 16
        %v2032 = vrot.slane %v2030, 5
        %v2033 = vsel %vm671, %v2028, %v2032
        %v2035 = vshrl.u32 %v1982, 16
        %v2037 = vrot.slane %v2035, 4
        %v2038 = vshll.u32 %v1982, 16
        %v2040 = vrot.slane %v2038, 5
        %v2041 = vor.u32 %v2037, %v2040
        %v2042 = vrot.slane %v2041, 4
        %v2044 = vshll.u32 %v1983, 16
        %v2046 = vrot.slane %v2044, 5
        %v2047 = vsel %vm671, %v2042, %v2046
        %v2049 = vshrl.u32 %v1984, 16
        %v2051 = vrot.slane %v2049, 4
        %v2052 = vshll.u32 %v1984, 16
        %v2054 = vrot.slane %v2052, 5
        %v2055 = vor.u32 %v2051, %v2054
        %v2056 = vrot.slane %v2055, 4
        %v2058 = vshll.u32 %v1985, 16
        %v2060 = vrot.slane %v2058, 5
        %v2061 = vsel %vm671, %v2056, %v2060
        %v2063 = vshrl.u32 %v1986, 16
        %v2065 = vrot.slane %v2063, 4
        %v2066 = vshll.u32 %v1986, 16
        %v2068 = vrot.slane %v2066, 5
        %v2069 = vor.u32 %v2065, %v2068
        %v2070 = vrot.slane %v2069, 4
        %v2072 = vshll.u32 %v1987, 16
        %v2074 = vrot.slane %v2072, 5
        %v2075 = vsel %vm671, %v2070, %v2074
        %v2077 = vshrl.u32 %v1988, 16
        %v2079 = vrot.slane %v2077, 4
        %v2080 = vshll.u32 %v1988, 16
        %v2082 = vrot.slane %v2080, 5
        %v2083 = vor.u32 %v2079, %v2082
        %v2084 = vrot.slane %v2083, 4
        %v2086 = vshll.u32 %v1989, 16
        %v2088 = vrot.slane %v2086, 5
        %v2089 = vsel %vm671, %v2084, %v2088
        %v2091 = vshrl.u32 %v1990, 16
        %v2093 = vrot.slane %v2091, 4
        %v2094 = vshll.u32 %v1990, 16
        %v2096 = vrot.slane %v2094, 5
        %v2097 = vor.u32 %v2093, %v2096
        %v2098 = vrot.slane %v2097, 4
        %v2100 = vshll.u32 %v1991, 16
        %v2102 = vrot.slane %v2100, 5
        %v2103 = vsel %vm671, %v2098, %v2102
        %2112 = vst [vmem:[#allocation3 + $0x4] sm:$0xf] %v2005
        %2113 = vst [vmem:[#allocation3 + $0x10] sm:$0xf] %v2019
        %2114 = vst [vmem:[#allocation3 + $0x1c] sm:$0xf] %v2033
        %2115 = vst [vmem:[#allocation3 + $0x28] sm:$0xf] %v2047
        %2116 = vst [vmem:[#allocation3 + $0x34] sm:$0xf] %v2061
        %2117 = vst [vmem:[#allocation3 + $0x40] sm:$0xf] %v2075
        %2118 = vst [vmem:[#allocation3 + $0x4c] sm:$0xf] %v2089
        %2119 = vst [vmem:[#allocation3 + $0x58] sm:$0xf] %v2103
        %v2120 = vld [vmem:[%s1959] sm:$0xe]
        %v2121 = vld [vmem:[%s1959 + $0x4] sm:$0x1]
        %v2122 = vld [vmem:[%s1959 + $0x8] sm:$0xe]
        %v2123 = vld [vmem:[%s1959 + $0xc] sm:$0x1]
        %v2124 = vld [vmem:[%s1959 + $0x10] sm:$0xe]
        %v2125 = vld [vmem:[%s1959 + $0x14] sm:$0x1]
        %v2126 = vld [vmem:[%s1959 + $0x18] sm:$0xe]
        %v2127 = vld [vmem:[%s1959 + $0x1c] sm:$0x1]
        %v2128 = vld [vmem:[%s1959 + $0x20] sm:$0xe]
        %v2129 = vld [vmem:[%s1959 + $0x24] sm:$0x1]
        %v2130 = vld [vmem:[%s1959 + $0x28] sm:$0xe]
        %v2131 = vld [vmem:[%s1959 + $0x2c] sm:$0x1]
        %v2132 = vld [vmem:[%s1959 + $0x30] sm:$0xe]
        %v2133 = vld [vmem:[%s1959 + $0x34] sm:$0x1]
        %v2134 = vld [vmem:[%s1959 + $0x38] sm:$0xe]
        %v2135 = vld [vmem:[%s1959 + $0x3c] sm:$0x1]
        %v2152 = vrot.slane %v2120, 5
        %v2153 = vrot.slane %v2152, 4
        %v2154 = vrot.slane %v2121, 5
        %v2155 = vsel %vm834, %v2153, %v2154
        %v2156 = vrot.slane %v2122, 5
        %v2157 = vrot.slane %v2156, 4
        %v2158 = vrot.slane %v2123, 5
        %v2159 = vsel %vm834, %v2157, %v2158
        %v2160 = vrot.slane %v2124, 5
        %v2161 = vrot.slane %v2160, 4
        %v2162 = vrot.slane %v2125, 5
        %v2163 = vsel %vm834, %v2161, %v2162
        %v2164 = vrot.slane %v2126, 5
        %v2165 = vrot.slane %v2164, 4
        %v2166 = vrot.slane %v2127, 5
        %v2167 = vsel %vm834, %v2165, %v2166
        %v2168 = vrot.slane %v2128, 5
        %v2169 = vrot.slane %v2168, 4
        %v2170 = vrot.slane %v2129, 5
        %v2171 = vsel %vm834, %v2169, %v2170
        %v2172 = vrot.slane %v2130, 5
        %v2173 = vrot.slane %v2172, 4
        %v2174 = vrot.slane %v2131, 5
        %v2175 = vsel %vm834, %v2173, %v2174
        %v2176 = vrot.slane %v2132, 5
        %v2177 = vrot.slane %v2176, 4
        %v2178 = vrot.slane %v2133, 5
        %v2179 = vsel %vm834, %v2177, %v2178
        %v2180 = vrot.slane %v2134, 5
        %v2181 = vrot.slane %v2180, 4
        %v2182 = vrot.slane %v2135, 5
        %v2183 = vsel %vm834, %v2181, %v2182
        %2192 = vst [vmem:[#allocation3 + $0x8] sm:$0xf] %v2155
        %2193 = vst [vmem:[#allocation3 + $0x14] sm:$0xf] %v2159
        %2194 = vst [vmem:[#allocation3 + $0x20] sm:$0xf] %v2163
        %2195 = vst [vmem:[#allocation3 + $0x2c] sm:$0xf] %v2167
        %2196 = vst [vmem:[#allocation3 + $0x38] sm:$0xf] %v2171
        %2197 = vst [vmem:[#allocation3 + $0x44] sm:$0xf] %v2175
        %2198 = vst [vmem:[#allocation3 + $0x50] sm:$0xf] %v2179
        %2199 = vst [vmem:[#allocation3 + $0x5c] sm:$0xf] %v2183
        %v2200 = vld [vmem:[#allocation3] sm:$0xff]
        %v2201 = vld [vmem:[#allocation3 + $0x8] sm:$0xf]
        %v2202 = vld [vmem:[#allocation3 + $0xc] sm:$0xff]
        %v2203 = vld [vmem:[#allocation3 + $0x14] sm:$0xf]
        %v2204 = vld [vmem:[#allocation3 + $0x18] sm:$0xff]
        %v2205 = vld [vmem:[#allocation3 + $0x20] sm:$0xf]
        %v2206 = vld [vmem:[#allocation3 + $0x24] sm:$0xff]
        %v2207 = vld [vmem:[#allocation3 + $0x2c] sm:$0xf]
        %v2208 = vld [vmem:[#allocation3 + $0x30] sm:$0xff]
        %v2209 = vld [vmem:[#allocation3 + $0x38] sm:$0xf]
        %v2210 = vld [vmem:[#allocation3 + $0x3c] sm:$0xff]
        %v2211 = vld [vmem:[#allocation3 + $0x44] sm:$0xf]
        %v2212 = vld [vmem:[#allocation3 + $0x48] sm:$0xff]
        %v2213 = vld [vmem:[#allocation3 + $0x50] sm:$0xf]
        %v2214 = vld [vmem:[#allocation3 + $0x54] sm:$0xff]
        %v2215 = vld [vmem:[#allocation3 + $0x5c] sm:$0xf]
        %v2216 = vld [vmem:[#allocation6 + $0x180] sm:$0xf]
        %v2217 = vld [vmem:[#allocation6 + $0x184] sm:$0xf]
        %v2218 = vld [vmem:[#allocation6 + $0x188] sm:$0xf]
        %v2219 = vld [vmem:[#allocation6 + $0x18c] sm:$0xf]
        %v2220 = vld [vmem:[#allocation6 + $0x190] sm:$0xf]
        %v2221 = vld [vmem:[#allocation6 + $0x194] sm:$0xf]
        %v2222 = vld [vmem:[#allocation6 + $0x198] sm:$0xf]
        %v2223 = vld [vmem:[#allocation6 + $0x19c] sm:$0xf]
        %v2224 = vld [vmem:[#allocation6 + $0x1a0] sm:$0xf]
        %v2225 = vld [vmem:[#allocation6 + $0x1a4] sm:$0xf]
        %v2226 = vld [vmem:[#allocation6 + $0x1a8] sm:$0xf]
        %v2227 = vld [vmem:[#allocation6 + $0x1ac] sm:$0xf]
        %v2228 = vld [vmem:[#allocation6 + $0x1b0] sm:$0xf]
        %v2229 = vld [vmem:[#allocation6 + $0x1b4] sm:$0xf]
        %v2230 = vld [vmem:[#allocation6 + $0x1b8] sm:$0xf]
        %v2231 = vld [vmem:[#allocation6 + $0x1bc] sm:$0xf]
        %v2232 = vld [vmem:[#allocation6 + $0x1c0] sm:$0xf]
        %v2233 = vld [vmem:[#allocation6 + $0x1c4] sm:$0xf]
        %v2234 = vld [vmem:[#allocation6 + $0x1c8] sm:$0xf]
        %v2235 = vld [vmem:[#allocation6 + $0x1cc] sm:$0xf]
        %v2236 = vld [vmem:[#allocation6 + $0x1d0] sm:$0xf]
        %v2237 = vld [vmem:[#allocation6 + $0x1d4] sm:$0xf]
        %v2238 = vld [vmem:[#allocation6 + $0x1d8] sm:$0xf]
        %v2239 = vld [vmem:[#allocation6 + $0x1dc] sm:$0xf]
        %v2240 = vld [vmem:[#allocation6 + $0x1e0] sm:$0xf]
        %v2241 = vld [vmem:[#allocation6 + $0x1e4] sm:$0xf]
        %v2242 = vld [vmem:[#allocation6 + $0x1e8] sm:$0xf]
        %v2243 = vld [vmem:[#allocation6 + $0x1ec] sm:$0xf]
        %v2244 = vld [vmem:[#allocation6 + $0x1f0] sm:$0xf]
        %v2245 = vld [vmem:[#allocation6 + $0x1f4] sm:$0xf]
        %v2246 = vld [vmem:[#allocation6 + $0x1f8] sm:$0xf]
        %v2247 = vld [vmem:[#allocation6 + $0x1fc] sm:$0xf]
        %v2248 = vld [vmem:[#allocation6 + $0x200] sm:$0xf]
        %v2249 = vld [vmem:[#allocation6 + $0x204] sm:$0xf]
        %v2250 = vld [vmem:[#allocation6 + $0x208] sm:$0xf]
        %v2251 = vld [vmem:[#allocation6 + $0x20c] sm:$0xf]
        %v2252 = vld [vmem:[#allocation6 + $0x210] sm:$0xf]
        %v2253 = vld [vmem:[#allocation6 + $0x214] sm:$0xf]
        %v2254 = vld [vmem:[#allocation6 + $0x218] sm:$0xf]
        %v2255 = vld [vmem:[#allocation6 + $0x21c] sm:$0xf]
        %v2256 = vld [vmem:[#allocation6 + $0x220] sm:$0xf]
        %v2257 = vld [vmem:[#allocation6 + $0x224] sm:$0xf]
        %v2258 = vld [vmem:[#allocation6 + $0x228] sm:$0xf]
        %v2259 = vld [vmem:[#allocation6 + $0x22c] sm:$0xf]
        %v2260 = vld [vmem:[#allocation6 + $0x230] sm:$0xf]
        %v2261 = vld [vmem:[#allocation6 + $0x234] sm:$0xf]
        %v2262 = vld [vmem:[#allocation6 + $0x238] sm:$0xf]
        %v2263 = vld [vmem:[#allocation6 + $0x23c] sm:$0xf]
        %v2280 = vunpack.c.l.b16 %v2200
        %v2281 = vunpack.c.h.b16 %v2200
        %v2282 = vunpack.c.l.b16 %v2201
        %v2283 = vunpack.c.l.b16 %v2202
        %v2284 = vunpack.c.h.b16 %v2202
        %v2285 = vunpack.c.l.b16 %v2203
        %v2286 = vunpack.c.l.b16 %v2204
        %v2287 = vunpack.c.h.b16 %v2204
        %v2288 = vunpack.c.l.b16 %v2205
        %v2289 = vunpack.c.l.b16 %v2206
        %v2290 = vunpack.c.h.b16 %v2206
        %v2291 = vunpack.c.l.b16 %v2207
        %v2292 = vunpack.c.l.b16 %v2208
        %v2293 = vunpack.c.h.b16 %v2208
        %v2294 = vunpack.c.l.b16 %v2209
        %v2295 = vunpack.c.l.b16 %v2210
        %v2296 = vunpack.c.h.b16 %v2210
        %v2297 = vunpack.c.l.b16 %v2211
        %v2298 = vunpack.c.l.b16 %v2212
        %v2299 = vunpack.c.h.b16 %v2212
        %v2300 = vunpack.c.l.b16 %v2213
        %v2301 = vunpack.c.l.b16 %v2214
        %v2302 = vunpack.c.h.b16 %v2214
        %v2303 = vunpack.c.l.b16 %v2215
        %v2304 = vpack.c.b16 %v2283, %v2280
        %v2305 = vpack.c.b16 %v2284, %v2281
        %v2306 = vpack.c.b16 %v2285, %v2282
        %v2307 = vpack.c.b16 %v2289, %v2286
        %v2308 = vpack.c.b16 %v2290, %v2287
        %v2309 = vpack.c.b16 %v2291, %v2288
        %v2310 = vpack.c.b16 %v2295, %v2292
        %v2311 = vpack.c.b16 %v2296, %v2293
        %v2312 = vpack.c.b16 %v2297, %v2294
        %v2313 = vpack.c.b16 %v2301, %v2298
        %v2314 = vpack.c.b16 %v2302, %v2299
        %v2315 = vpack.c.b16 %v2303, %v2300
        %v2376 = vunpack.c.l.b16 %v2216
        %v2377 = vunpack.c.l.b16 %v2217
        %v2378 = vunpack.c.l.b16 %v2218
        %v2379 = vunpack.c.l.b16 %v2219
        %v2380 = vunpack.c.l.b16 %v2220
        %v2381 = vunpack.c.l.b16 %v2221
        %v2382 = vunpack.c.l.b16 %v2222
        %v2383 = vunpack.c.l.b16 %v2223
        %v2384 = vunpack.c.l.b16 %v2224
        %v2385 = vunpack.c.l.b16 %v2225
        %v2386 = vunpack.c.l.b16 %v2226
        %v2387 = vunpack.c.l.b16 %v2227
        %v2388 = vunpack.c.l.b16 %v2228
        %v2389 = vunpack.c.l.b16 %v2229
        %v2390 = vunpack.c.l.b16 %v2230
        %v2391 = vunpack.c.l.b16 %v2231
        %v2392 = vunpack.c.l.b16 %v2232
        %v2393 = vunpack.c.l.b16 %v2233
        %v2394 = vunpack.c.l.b16 %v2234
        %v2395 = vunpack.c.l.b16 %v2235
        %v2396 = vunpack.c.l.b16 %v2236
        %v2397 = vunpack.c.l.b16 %v2237
        %v2398 = vunpack.c.l.b16 %v2238
        %v2399 = vunpack.c.l.b16 %v2239
        %v2400 = vunpack.c.l.b16 %v2240
        %v2401 = vunpack.c.l.b16 %v2241
        %v2402 = vunpack.c.l.b16 %v2242
        %v2403 = vunpack.c.l.b16 %v2243
        %v2404 = vunpack.c.l.b16 %v2244
        %v2405 = vunpack.c.l.b16 %v2245
        %v2406 = vunpack.c.l.b16 %v2246
        %v2407 = vunpack.c.l.b16 %v2247
        %v2408 = vunpack.c.l.b16 %v2248
        %v2409 = vunpack.c.l.b16 %v2249
        %v2410 = vunpack.c.l.b16 %v2250
        %v2411 = vunpack.c.l.b16 %v2251
        %v2412 = vunpack.c.l.b16 %v2252
        %v2413 = vunpack.c.l.b16 %v2253
        %v2414 = vunpack.c.l.b16 %v2254
        %v2415 = vunpack.c.l.b16 %v2255
        %v2416 = vunpack.c.l.b16 %v2256
        %v2417 = vunpack.c.l.b16 %v2257
        %v2418 = vunpack.c.l.b16 %v2258
        %v2419 = vunpack.c.l.b16 %v2259
        %v2420 = vunpack.c.l.b16 %v2260
        %v2421 = vunpack.c.l.b16 %v2261
        %v2422 = vunpack.c.l.b16 %v2262
        %v2423 = vunpack.c.l.b16 %v2263
        %v2424 = vpack.c.b16 %v2377, %v2376
        %v2425 = vpack.c.b16 %v2379, %v2378
        %v2426 = vpack.c.b16 %v2381, %v2380
        %v2427 = vpack.c.b16 %v2383, %v2382
        %v2428 = vpack.c.b16 %v2385, %v2384
        %v2429 = vpack.c.b16 %v2387, %v2386
        %v2430 = vpack.c.b16 %v2389, %v2388
        %v2431 = vpack.c.b16 %v2391, %v2390
        %v2432 = vpack.c.b16 %v2393, %v2392
        %v2433 = vpack.c.b16 %v2395, %v2394
        %v2434 = vpack.c.b16 %v2397, %v2396
        %v2435 = vpack.c.b16 %v2399, %v2398
        %v2436 = vpack.c.b16 %v2401, %v2400
        %v2437 = vpack.c.b16 %v2403, %v2402
        %v2438 = vpack.c.b16 %v2405, %v2404
        %v2439 = vpack.c.b16 %v2407, %v2406
        %v2440 = vpack.c.b16 %v2409, %v2408
        %v2441 = vpack.c.b16 %v2411, %v2410
        %v2442 = vpack.c.b16 %v2413, %v2412
        %v2443 = vpack.c.b16 %v2415, %v2414
        %v2444 = vpack.c.b16 %v2417, %v2416
        %v2445 = vpack.c.b16 %v2419, %v2418
        %v2446 = vpack.c.b16 %v2421, %v2420
        %v2447 = vpack.c.b16 %v2423, %v2422
        %2472 = vmatprep.subr.bf16.mxu0 0
        %2473 = vmatpush1.bf16.msra.mxu0 %v2431
        %2474 = vmatprep.subr.bf16.mxu0 0
        %2475 = vmatpush1.bf16.msra.mxu0 %v2430
        %2476 = vmatprep.subr.bf16.mxu0 0
        %2477 = vmatpush1.bf16.msra.mxu0 %v2429
        %2478 = vmatprep.subr.bf16.mxu0 0
        %2479 = vmatpush1.bf16.msra.mxu0 %v2428
        %2480 = vmatprep.subr.bf16.mxu0 0
        %2481 = vmatpush1.bf16.msra.mxu0 %v2427
        %2482 = vmatprep.subr.bf16.mxu0 0
        %2483 = vmatpush1.bf16.msra.mxu0 %v2426
        %2484 = vmatprep.subr.bf16.mxu0 0
        %2485 = vmatpush1.bf16.msra.mxu0 %v2425
        %2486 = vmatprep.subr.bf16.mxu0 0
        %2487 = vmatpush1.bf16.msra.mxu0 %v2424
        %2488 = vmatprep.subr.bf16.mxu0 0
        %2489 = vmatpush2.bf16.msra.mxu0 %v2439
        %2490 = vmatprep.subr.bf16.mxu0 0
        %2491 = vmatpush2.bf16.msra.mxu0 %v2438
        %2492 = vmatprep.subr.bf16.mxu0 0
        %2493 = vmatpush2.bf16.msra.mxu0 %v2437
        %2494 = vmatprep.subr.bf16.mxu0 0
        %2495 = vmatpush2.bf16.msra.mxu0 %v2436
        %2496 = vmatprep.subr.bf16.mxu0 0
        %2497 = vmatpush2.bf16.msra.mxu0 %v2435
        %2498 = vmatprep.subr.bf16.mxu0 0
        %2499 = vmatpush2.bf16.msra.mxu0 %v2434
        %2500 = vmatprep.subr.bf16.mxu0 0
        %2501 = vmatpush2.bf16.msra.mxu0 %v2433
        %2502 = vmatprep.subr.bf16.mxu0 0
        %2503 = vmatpush2.bf16.msra.mxu0 %v2432
        %2504 = vmatprep.mubr.bf16.mxu0 %v2305
        %2505 = vmatmul.mubr.bf16.gmra.mxu0 %v2304
        %v2506 = vpop.f32.mrf.mxu0
        %v2507 = vadd.f32 0.0, %v2506
        %v2508 = vpop.f32.mrf.mxu0
        %v2509 = vpop.f32.mrf.mxu0
        %v2510 = vadd.f32 0.0, %v2509
        %v2511 = vpop.f32.mrf.mxu0
        %2512 = vmatprep.mubr.bf16.mxu0 %v2308
        %2513 = vmatmul.mubr.bf16.gmra.mxu0 %v2307
        %v2514 = vpop.f32.mrf.mxu0
        %v2515 = vadd.f32 0.0, %v2514
        %v2516 = vpop.f32.mrf.mxu0
        %v2517 = vpop.f32.mrf.mxu0
        %v2518 = vadd.f32 0.0, %v2517
        %v2519 = vpop.f32.mrf.mxu0
        %2520 = vmatprep.mubr.bf16.mxu0 %v2311
        %2521 = vmatmul.mubr.bf16.gmra.mxu0 %v2310
        %v2522 = vpop.f32.mrf.mxu0
        %v2523 = vadd.f32 0.0, %v2522
        %v2524 = vpop.f32.mrf.mxu0
        %v2525 = vpop.f32.mrf.mxu0
        %v2526 = vadd.f32 0.0, %v2525
        %v2527 = vpop.f32.mrf.mxu0
        %2528 = vmatprep.mubr.bf16.mxu0 %v2314
        %2529 = vmatmul.mubr.bf16.gmra.mxu0 %v2313
        %v2530 = vpop.f32.mrf.mxu0
        %v2531 = vadd.f32 0.0, %v2530
        %v2532 = vpop.f32.mrf.mxu0
        %v2533 = vpop.f32.mrf.mxu0
        %v2534 = vadd.f32 0.0, %v2533
        %v2535 = vpop.f32.mrf.mxu0
        %2536 = vdwg.mxu0
        %2537 = vmatprep.subr.bf16.mxu0 0
        %2538 = vmatpush1.bf16.msra.mxu0 %v2447
        %2539 = vmatprep.subr.bf16.mxu0 0
        %2540 = vmatpush1.bf16.msra.mxu0 %v2446
        %2541 = vmatprep.subr.bf16.mxu0 0
        %2542 = vmatpush1.bf16.msra.mxu0 %v2445
        %2543 = vmatprep.subr.bf16.mxu0 0
        %2544 = vmatpush1.bf16.msra.mxu0 %v2444
        %2545 = vmatprep.subr.bf16.mxu0 0
        %2546 = vmatpush1.bf16.msra.mxu0 %v2443
        %2547 = vmatprep.subr.bf16.mxu0 0
        %2548 = vmatpush1.bf16.msra.mxu0 %v2442
        %2549 = vmatprep.subr.bf16.mxu0 0
        %2550 = vmatpush1.bf16.msra.mxu0 %v2441
        %2551 = vmatprep.subr.bf16.mxu0 0
        %2552 = vmatpush1.bf16.msra.mxu0 %v2440
        %2553 = vmatprep.subr.bf16.mxu0 0
        %2554 = vmatpush2.bf16.msra.mxu0 0
        %2555 = vmatprep.subr.bf16.mxu0 0
        %2556 = vmatpush2.bf16.msra.mxu0 0
        %2557 = vmatprep.subr.bf16.mxu0 0
        %2558 = vmatpush2.bf16.msra.mxu0 0
        %2559 = vmatprep.subr.bf16.mxu0 0
        %2560 = vmatpush2.bf16.msra.mxu0 0
        %2561 = vmatprep.subr.bf16.mxu0 0
        %2562 = vmatpush2.bf16.msra.mxu0 0
        %2563 = vmatprep.subr.bf16.mxu0 0
        %2564 = vmatpush2.bf16.msra.mxu0 0
        %2565 = vmatprep.subr.bf16.mxu0 0
        %2566 = vmatpush2.bf16.msra.mxu0 0
        %2567 = vmatprep.subr.bf16.mxu0 0
        %2568 = vmatpush2.bf16.msra.mxu0 0
        %2569 = vmatprep.mubr.bf16.mxu0 0
        %2570 = vmatmul.mubr.bf16.gmra.mxu0 %v2306
        %v2571 = vpop.f32.mrf.mxu0
        %v2572 = vadd.f32 %v2507, %v2571
        %v2573 = vpop.f32.mrf.mxu0
        %v2574 = vpop.f32.mrf.mxu0
        %v2575 = vadd.f32 %v2510, %v2574
        %v2576 = vpop.f32.mrf.mxu0
        %2577 = vmatprep.mubr.bf16.mxu0 0
        %2578 = vmatmul.mubr.bf16.gmra.mxu0 %v2309
        %v2579 = vpop.f32.mrf.mxu0
        %v2580 = vadd.f32 %v2515, %v2579
        %v2581 = vpop.f32.mrf.mxu0
        %v2582 = vpop.f32.mrf.mxu0
        %v2583 = vadd.f32 %v2518, %v2582
        %v2584 = vpop.f32.mrf.mxu0
        %2585 = vmatprep.mubr.bf16.mxu0 0
        %2586 = vmatmul.mubr.bf16.gmra.mxu0 %v2312
        %v2587 = vpop.f32.mrf.mxu0
        %v2588 = vadd.f32 %v2523, %v2587
        %v2589 = vpop.f32.mrf.mxu0
        %v2590 = vpop.f32.mrf.mxu0
        %v2591 = vadd.f32 %v2526, %v2590
        %v2592 = vpop.f32.mrf.mxu0
        %2593 = vmatprep.mubr.bf16.mxu0 0
        %2594 = vmatmul.mubr.bf16.gmra.mxu0 %v2315
        %v2595 = vpop.f32.mrf.mxu0
        %v2596 = vadd.f32 %v2531, %v2595
        %v2597 = vpop.f32.mrf.mxu0
        %v2598 = vpop.f32.mrf.mxu0
        %v2599 = vadd.f32 %v2534, %v2598
        %v2600 = vpop.f32.mrf.mxu0
        %2601 = vdwg.mxu0
        %v2602 = vld [vmem:[#allocation5] sm:$0xff]
        %v2603 = vld [vmem:[#allocation5 + $0x8] sm:$0xff]
        %v2604 = vld [vmem:[#allocation5 + $0x10] sm:$0xff]
        %v2605 = vld [vmem:[#allocation5 + $0x18] sm:$0xff]
        %v2606 = vld [vmem:[#allocation5 + $0x20] sm:$0xff]
        %v2607 = vld [vmem:[#allocation5 + $0x28] sm:$0xff]
        %v2608 = vld [vmem:[#allocation5 + $0x30] sm:$0xff]
        %v2609 = vld [vmem:[#allocation5 + $0x38] sm:$0xff]
        %v2610 = vadd.f32 %v2602, %v2572
        %v2611 = vadd.f32 %v2603, %v2575
        %v2612 = vadd.f32 %v2604, %v2580
        %v2613 = vadd.f32 %v2605, %v2583
        %v2614 = vadd.f32 %v2606, %v2588
        %v2615 = vadd.f32 %v2607, %v2591
        %v2616 = vadd.f32 %v2608, %v2596
        %v2617 = vadd.f32 %v2609, %v2599
        %2618 = vst [vmem:[#allocation5] sm:$0xff] %v2610
        %2619 = vst [vmem:[#allocation5 + $0x8] sm:$0xff] %v2611
        %2620 = vst [vmem:[#allocation5 + $0x10] sm:$0xff] %v2612
        %2621 = vst [vmem:[#allocation5 + $0x18] sm:$0xff] %v2613
        %2622 = vst [vmem:[#allocation5 + $0x20] sm:$0xff] %v2614
        %2623 = vst [vmem:[#allocation5 + $0x28] sm:$0xff] %v2615
        %2624 = vst [vmem:[#allocation5 + $0x30] sm:$0xff] %v2616
        %2625 = vst [vmem:[#allocation5 + $0x38] sm:$0xff] %v2617
        %v2626 = vld [vmem:[#allocation5] sm:$0xff]
        %v2627 = vld [vmem:[#allocation5 + $0x8] sm:$0xff]
        %v2628 = vld [vmem:[#allocation5 + $0x10] sm:$0xff]
        %v2629 = vld [vmem:[#allocation5 + $0x18] sm:$0xff]
        %v2630 = vld [vmem:[#allocation5 + $0x20] sm:$0xff]
        %v2631 = vld [vmem:[#allocation5 + $0x28] sm:$0xff]
        %v2632 = vld [vmem:[#allocation5 + $0x30] sm:$0xff]
        %v2633 = vld [vmem:[#allocation5 + $0x38] sm:$0xff]
        %v2634 = vld [vmem:[%s5] sm:$0x1]
        %v2636 = vlaneseq
        %v2637 = vshrl.u32 %v2636, 7
        %v2638 = vsub.s32 0, %v2637
        %v2639 = vrot.slane %v2634, %v2638
        %v2641 = vadd.f32 %v2626, %v2639
        %v2642 = vadd.f32 %v2627, %v2639
        %v2643 = vadd.f32 %v2628, %v2639
        %v2644 = vadd.f32 %v2629, %v2639
        %v2645 = vadd.f32 %v2630, %v2639
        %v2646 = vadd.f32 %v2631, %v2639
        %v2647 = vadd.f32 %v2632, %v2639
        %v2648 = vadd.f32 %v2633, %v2639
        %v2649 = vmax.f32 %v2641, 0.0
        %v2650 = vmax.f32 %v2642, 0.0
        %v2651 = vmax.f32 %v2643, 0.0
        %v2652 = vmax.f32 %v2644, 0.0
        %v2653 = vmax.f32 %v2645, 0.0
        %v2654 = vmax.f32 %v2646, 0.0
        %v2655 = vmax.f32 %v2647, 0.0
        %v2656 = vmax.f32 %v2648, 0.0
        %v2657 = vpack.c.bf16 %v2650, %v2649
        %v2658 = vpack.c.bf16 %v2652, %v2651
        %v2659 = vpack.c.bf16 %v2654, %v2653
        %v2660 = vpack.c.bf16 %v2656, %v2655
        %v2661 = vld [vmem:[%s3] sm:$0xf]
        %v2662 = vld [vmem:[%s3 + $0x4] sm:$0xf]
        %v2663 = vld [vmem:[%s3 + $0x8] sm:$0xf]
        %v2664 = vld [vmem:[%s3 + $0xc] sm:$0xf]
        %v2665 = vld [vmem:[%s3 + $0x10] sm:$0xf]
        %v2666 = vld [vmem:[%s3 + $0x14] sm:$0xf]
        %v2667 = vld [vmem:[%s3 + $0x18] sm:$0xf]
        %v2668 = vld [vmem:[%s3 + $0x1c] sm:$0xf]
        %v2669 = vld [vmem:[%s3 + $0x20] sm:$0xf]
        %v2670 = vld [vmem:[%s3 + $0x24] sm:$0xf]
        %v2671 = vld [vmem:[%s3 + $0x28] sm:$0xf]
        %v2672 = vld [vmem:[%s3 + $0x2c] sm:$0xf]
        %v2673 = vld [vmem:[%s3 + $0x30] sm:$0xf]
        %v2674 = vld [vmem:[%s3 + $0x34] sm:$0xf]
        %v2675 = vld [vmem:[%s3 + $0x38] sm:$0xf]
        %v2676 = vld [vmem:[%s3 + $0x3c] sm:$0xf]
        %v2677 = vld [vmem:[%s6] sm:$0x1]
        %v2679 = vlaneseq
        %v2680 = vshrl.u32 %v2679, 7
        %v2681 = vsub.s32 0, %v2680
        %v2682 = vrot.slane %v2677, %v2681
        %v2700 = vunpack.c.l.b16 %v2661
        %v2701 = vunpack.c.l.b16 %v2662
        %v2702 = vunpack.c.l.b16 %v2663
        %v2703 = vunpack.c.l.b16 %v2664
        %v2704 = vunpack.c.l.b16 %v2665
        %v2705 = vunpack.c.l.b16 %v2666
        %v2706 = vunpack.c.l.b16 %v2667
        %v2707 = vunpack.c.l.b16 %v2668
        %v2708 = vunpack.c.l.b16 %v2669
        %v2709 = vunpack.c.l.b16 %v2670
        %v2710 = vunpack.c.l.b16 %v2671
        %v2711 = vunpack.c.l.b16 %v2672
        %v2712 = vunpack.c.l.b16 %v2673
        %v2713 = vunpack.c.l.b16 %v2674
        %v2714 = vunpack.c.l.b16 %v2675
        %v2715 = vunpack.c.l.b16 %v2676
        %v2716 = vpack.c.b16 %v2701, %v2700
        %v2717 = vpack.c.b16 %v2703, %v2702
        %v2718 = vpack.c.b16 %v2705, %v2704
        %v2719 = vpack.c.b16 %v2707, %v2706
        %v2720 = vpack.c.b16 %v2709, %v2708
        %v2721 = vpack.c.b16 %v2711, %v2710
        %v2722 = vpack.c.b16 %v2713, %v2712
        %v2723 = vpack.c.b16 %v2715, %v2714
        %2732 = vmatprep.subr.bf16.mxu0 0
        %2733 = vmatpush1.bf16.msra.mxu0 %v2723
        %2734 = vmatprep.subr.bf16.mxu0 0
        %2735 = vmatpush1.bf16.msra.mxu0 %v2722
        %2736 = vmatprep.subr.bf16.mxu0 0
        %2737 = vmatpush1.bf16.msra.mxu0 %v2721
        %2738 = vmatprep.subr.bf16.mxu0 0
        %2739 = vmatpush1.bf16.msra.mxu0 %v2720
        %2740 = vmatprep.subr.bf16.mxu0 0
        %2741 = vmatpush1.bf16.msra.mxu0 %v2719
        %2742 = vmatprep.subr.bf16.mxu0 0
        %2743 = vmatpush1.bf16.msra.mxu0 %v2718
        %2744 = vmatprep.subr.bf16.mxu0 0
        %2745 = vmatpush1.bf16.msra.mxu0 %v2717
        %2746 = vmatprep.subr.bf16.mxu0 0
        %2747 = vmatpush1.bf16.msra.mxu0 %v2716
        %2748 = vmatprep.subr.bf16.mxu0 0
        %2749 = vmatpush2.bf16.msra.mxu0 0
        %2750 = vmatprep.subr.bf16.mxu0 0
        %2751 = vmatpush2.bf16.msra.mxu0 0
        %2752 = vmatprep.subr.bf16.mxu0 0
        %2753 = vmatpush2.bf16.msra.mxu0 0
        %2754 = vmatprep.subr.bf16.mxu0 0
        %2755 = vmatpush2.bf16.msra.mxu0 0
        %2756 = vmatprep.subr.bf16.mxu0 0
        %2757 = vmatpush2.bf16.msra.mxu0 0
        %2758 = vmatprep.subr.bf16.mxu0 0
        %2759 = vmatpush2.bf16.msra.mxu0 0
        %2760 = vmatprep.subr.bf16.mxu0 0
        %2761 = vmatpush2.bf16.msra.mxu0 0
        %2762 = vmatprep.subr.bf16.mxu0 0
        %2763 = vmatpush2.bf16.msra.mxu0 0
        %2764 = vmatprep.mubr.bf16.mxu0 0
        %2765 = vmatmul.mubr.bf16.gmra.mxu0 %v2657
        %v2766 = vpop.f32.mrf.mxu0
        %v2767 = vadd.f32 %v2682, %v2766
        %v2768 = vpop.f32.mrf.mxu0
        %v2769 = vpop.f32.mrf.mxu0
        %v2770 = vadd.f32 %v2682, %v2769
        %v2771 = vpop.f32.mrf.mxu0
        %2772 = vmatprep.mubr.bf16.mxu0 0
        %2773 = vmatmul.mubr.bf16.gmra.mxu0 %v2658
        %v2774 = vpop.f32.mrf.mxu0
        %v2775 = vadd.f32 %v2682, %v2774
        %v2776 = vpop.f32.mrf.mxu0
        %v2777 = vpop.f32.mrf.mxu0
        %v2778 = vadd.f32 %v2682, %v2777
        %v2779 = vpop.f32.mrf.mxu0
        %2780 = vmatprep.mubr.bf16.mxu0 0
        %2781 = vmatmul.mubr.bf16.gmra.mxu0 %v2659
        %v2782 = vpop.f32.mrf.mxu0
        %v2783 = vadd.f32 %v2682, %v2782
        %v2784 = vpop.f32.mrf.mxu0
        %v2785 = vpop.f32.mrf.mxu0
        %v2786 = vadd.f32 %v2682, %v2785
        %v2787 = vpop.f32.mrf.mxu0
        %2788 = vmatprep.mubr.bf16.mxu0 0
        %2789 = vmatmul.mubr.bf16.gmra.mxu0 %v2660
        %v2790 = vpop.f32.mrf.mxu0
        %v2791 = vadd.f32 %v2682, %v2790
        %v2792 = vpop.f32.mrf.mxu0
        %v2793 = vpop.f32.mrf.mxu0
        %v2794 = vadd.f32 %v2682, %v2793
        %v2795 = vpop.f32.mrf.mxu0
        %2796 = vdwg.mxu0
        %v2797 = vld [vmem:[%s288] sm:$0xf]
        %v2798 = vld [vmem:[%s288 + $0x4] sm:$0xf]
        %v2799 = vld [vmem:[%s288 + $0x8] sm:$0xf]
        %v2800 = vld [vmem:[%s288 + $0xc] sm:$0xf]
        %v2801 = vld [vmem:[%s288 + $0x10] sm:$0xf]
        %v2802 = vld [vmem:[%s288 + $0x14] sm:$0xf]
        %v2803 = vld [vmem:[%s288 + $0x18] sm:$0xf]
        %v2804 = vld [vmem:[%s288 + $0x1c] sm:$0xf]
        %v2805 = vunpack.c.l.bf16 %v2797
        %v2806 = vunpack.c.l.bf16 %v2798
        %v2807 = vunpack.c.l.bf16 %v2799
        %v2808 = vunpack.c.l.bf16 %v2800
        %v2809 = vunpack.c.l.bf16 %v2801
        %v2810 = vunpack.c.l.bf16 %v2802
        %v2811 = vunpack.c.l.bf16 %v2803
        %v2812 = vunpack.c.l.bf16 %v2804
        %v2813 = vadd.f32 %v2767, %v2805
        %v2814 = vadd.f32 %v2770, %v2806
        %v2815 = vadd.f32 %v2775, %v2807
        %v2816 = vadd.f32 %v2778, %v2808
        %v2817 = vadd.f32 %v2783, %v2809
        %v2818 = vadd.f32 %v2786, %v2810
        %v2819 = vadd.f32 %v2791, %v2811
        %v2820 = vadd.f32 %v2794, %v2812
        %v2821 = vmax.f32 %v2813, 0.0
        %v2822 = vmax.f32 %v2814, 0.0
        %v2823 = vmax.f32 %v2815, 0.0
        %v2824 = vmax.f32 %v2816, 0.0
        %v2825 = vmax.f32 %v2817, 0.0
        %v2826 = vmax.f32 %v2818, 0.0
        %v2827 = vmax.f32 %v2819, 0.0
        %v2828 = vmax.f32 %v2820, 0.0
        %v2829 = vpack.c.bf16 %v2822, %v2821
        %v2830 = vpack.c.bf16 %v2824, %v2823
        %v2831 = vpack.c.bf16 %v2826, %v2825
        %v2832 = vpack.c.bf16 %v2828, %v2827
        %v2837 = vunpack.c.l.b16 %v2829
        %v2838 = vunpack.c.h.b16 %v2829
        %v2839 = vunpack.c.l.b16 %v2830
        %v2840 = vunpack.c.h.b16 %v2830
        %v2841 = vunpack.c.l.b16 %v2831
        %v2842 = vunpack.c.h.b16 %v2831
        %v2843 = vunpack.c.l.b16 %v2832
        %v2844 = vunpack.c.h.b16 %v2832
        %v2845 = vpack.c.b16 %v2837, %v2837
        %v2846 = vpack.c.b16 %v2838, %v2838
        %v2847 = vpack.c.b16 %v2839, %v2839
        %v2848 = vpack.c.b16 %v2840, %v2840
        %v2849 = vpack.c.b16 %v2841, %v2841
        %v2850 = vpack.c.b16 %v2842, %v2842
        %v2851 = vpack.c.b16 %v2843, %v2843
        %v2852 = vpack.c.b16 %v2844, %v2844
        %vm2861 = vcmask 125952
        %2862 = vst.msk [vmem:[%s293] sm:$0xf] %vm2861, %v2845
        %2863 = vst.msk [vmem:[%s293 + $0x4] sm:$0xf] %vm2861, %v2846
        %2864 = vst.msk [vmem:[%s293 + $0x8] sm:$0xf] %vm2861, %v2847
        %2865 = vst.msk [vmem:[%s293 + $0xc] sm:$0xf] %vm2861, %v2848
        %2866 = vst.msk [vmem:[%s293 + $0x10] sm:$0xf] %vm2861, %v2849
        %2867 = vst.msk [vmem:[%s293 + $0x14] sm:$0xf] %vm2861, %v2850
        %2868 = vst.msk [vmem:[%s293 + $0x18] sm:$0xf] %vm2861, %v2851
        %2869 = vst.msk [vmem:[%s293 + $0x1c] sm:$0xf] %vm2861, %v2852
        %p2870 = scmp.lt.s32.totalorder %s19, 1
        %s2871 = scalar_select %p2870, %s19, 1
        %s2872 = smul.addr %s2871, 8
        %s2873 = smul.addr %s2872, 4
        %s2874 = scalar_lea.vmem %s7, %s2873
        // Predicated region
        $region53: #{tpu_custom_call.1} parent=47 // pred_check
          %p2875 = pneg %p189
        $region54: #{tpu_custom_call.1} parent=47 // pred_check_branch
          %2877 = sbr.rel (%p2875) target = $region56
        $region55: #{tpu_custom_call.1} parent=47 // pred_region
          _
        $region56: #{tpu_custom_call.1} parent=47 // pred_fallthru
          _
      $region48: #{tpu_custom_call.1} parent=5 // pred_fallthru
        _
      %p2878 = scmp.le.s32.totalorder 2, %s14
      // Predicated region
      $region57: #{tpu_custom_call.1} parent=5 // pred_check
        %p2879 = pneg %p2878
      $region58: #{tpu_custom_call.1} parent=5 // pred_check_branch
        %2881 = sbr.rel (%p2879) target = $region60
      $region59: #{tpu_custom_call.1} parent=5 // pred_region
        %s2882 = ssub.s32 %s14, 2
        // Predicated region
        $region61: #{tpu_custom_call.1} parent=59 // pred_check
          %p2883 = pneg %p195
        $region62: #{tpu_custom_call.1} parent=59 // pred_check_branch
          %2885 = sbr.rel (%p2883) target = $region64
        $region63: #{tpu_custom_call.1} parent=59 // pred_region
          %p2886 = scmp.lt.s32.totalorder %s20, 1
          %s2887 = scalar_select %p2886, %s20, 1
          %s2888 = smul.addr %s2887, 8
          %s2889 = smul.addr %s2888, 4
          %s2890 = scalar_lea.vmem %s7, %s2889
        $region64: #{tpu_custom_call.1} parent=59 // pred_fallthru
          _
      $region60: #{tpu_custom_call.1} parent=5 // pred_fallthru
        _
    $region6: #{tpu_custom_call.1} parent=1 // loop_footer
      %s18 = sadd.s32 1, %s14
    $region7: #{tpu_custom_call.1} parent=1 // loop_footer_branch
      %13 = sbr.rel target = $region3
    $region8: #{tpu_custom_call.1} parent=1 // loop_exit
      _
    %2891 = vsyncpa [#allocation7], 1
    %s2892 = scalar_lea.sflag [#allocation7], 1
    %2893 = vsyncpa %s2892, 1

</llo_original>
